<compile_context>
chip_gen: v5e
topology: v5e:2x2
jax: 0.10.0
libtpu: 0.0.40
codegen_flags: <defaults>
</compile_context>

<pallas_src>
import functools

import jax
import jax.numpy as jnp
from jax.experimental import pallas as pl
from jax.experimental.pallas import tpu as pltpu

_LANE = 128  # leading pad of the flat halo scratch; keeps the interior store lane-aligned


# ----------------------------- Pallas kernels ------------------------------ #

def _conv3x3_kernel(masks_ref, x_ref, w_ref, sc_ref, sh_ref,
                    y_ref, s_ref, ss_ref,
                    xpad_ref, patches_ref,
                    *, H, W, Cin, Cout, apply_input_act):
    """3x3 same-padding conv (one batch element) + per-channel partial stats.

    x_ref:  (1, Cin, H*W) f32   input tile, NCHW-flat (lane axis = H*W)
    w_ref:  (Cout, 9*Cin) bf16  folded conv weight (tap-major, channel-minor)
    sc/sh:  (Cin, 1) f32        previous layer's folded BN scale/shift (optional)
    y_ref:  (1, Cout, H*W) f32  raw conv output (pre-BN)
    s_ref/ss_ref: (1, Cout, 1)  per-batch-element sum / sum-of-squares
    """
    HW = H * W

    # Load the tile; optionally apply the previous layer's BN+ReLU (fused).
    x = x_ref[0]                                      # (Cin, HW) f32
    if apply_input_act:
        x = jnp.maximum(x * sc_ref[...] + sh_ref[...], 0.0)

    # Flat zero-padded copy: lanes [_LANE, _LANE+HW) hold the image, the rest
    # stays 0 so shifted tap reads outside the image see zeros.
    xpad_ref[...] = jnp.zeros(xpad_ref.shape, xpad_ref.dtype)
    xpad_ref[:, _LANE:_LANE + HW] = x                 # lane-aligned store

    # im2col: tap k = 3*dh + dw reads the image shifted by (di, dj) = (dh-1, dw-1),
    # which in the flat layout is a lane shift of di*W + dj.  masks_ref[k] zeroes
    # positions whose shifted pixel falls outside the image (conv zero padding,
    # including row wrap-around).
    k = 0
    for di in (-1, 0, 1):
        for dj in (-1, 0, 1):
            start = _LANE + di * W + dj
            patches_ref[k] = xpad_ref[:, start:start + HW] * masks_ref[k]
            k += 1

    # One MXU matmul, bf16 operands, f32 accumulation:
    # (Cout, 9*Cin) @ (9*Cin, HW) -> (Cout, HW)   (lane-dense output)
    rhs = patches_ref[...].reshape(9 * Cin, HW).astype(jnp.bfloat16)
    acc = jnp.dot(w_ref[...], rhs, preferred_element_type=jnp.float32)

    y_ref[0] = acc
    # Per-batch-element partial BN statistics (summed in the JAX glue).
    s_ref[0] = acc.sum(axis=1, keepdims=True)
    ss_ref[0] = (acc * acc).sum(axis=1, keepdims=True)


def _affine_relu_kernel(y_ref, sc_ref, sh_ref, o_ref):
    """Folded BN (per-row scale/shift) + ReLU, lane-dense 2-D elementwise pass."""
    o_ref[...] = jnp.maximum(y_ref[...] * sc_ref[...] + sh_ref[...], 0.0)


# ------------------------------ JAX wrappers -------------------------------- #

def _conv3x3_bn_stats(x_flat, masks, w_mat, scale_in, shift_in, *,
                      H, W, Cout, apply_input_act):
    """Conv2d(3x3, pad=1, no bias) on NCHW-flat input + per-sample BN stats."""
    N, Cin, HW = x_flat.shape
    assert W + 1 <= _LANE, "halo scratch assumes W + 1 <= 128"
    padl = 2 * _LANE + HW

    kernel = functools.partial(_conv3x3_kernel, H=H, W=W, Cin=Cin, Cout=Cout,
                               apply_input_act=apply_input_act)
    y, s, ss = pl.pallas_call(
        kernel,
        out_shape=(
            jax.ShapeDtypeStruct((N, Cout, HW), jnp.float32),
            jax.ShapeDtypeStruct((N, Cout, 1), jnp.float32),
            jax.ShapeDtypeStruct((N, Cout, 1), jnp.float32),
        ),
        grid=(N,),
        in_specs=[
            pl.BlockSpec((9, 1, HW), lambda n: (0, 0, 0)),        # tap masks
            pl.BlockSpec((1, Cin, HW), lambda n: (n, 0, 0)),      # input tile
            pl.BlockSpec((Cout, 9 * Cin), lambda n: (0, 0)),      # folded weights
            pl.BlockSpec((Cin, 1), lambda n: (0, 0)),             # fused BN scale
            pl.BlockSpec((Cin, 1), lambda n: (0, 0)),             # fused BN shift
        ],
        out_specs=(
            pl.BlockSpec((1, Cout, HW), lambda n: (n, 0, 0)),
            pl.BlockSpec((1, Cout, 1), lambda n: (n, 0, 0)),
            pl.BlockSpec((1, Cout, 1), lambda n: (n, 0, 0)),
        ),
        scratch_shapes=[
            pltpu.VMEM((Cin, padl), jnp.float32),     # flat halo-padded tile
            pltpu.VMEM((9, Cin, HW), jnp.float32),    # im2col patch matrix
        ],
        compiler_params=pltpu.CompilerParams(
            dimension_semantics=("parallel",)),       # per-n stats rows => megacore-safe
    )(masks, x_flat, w_mat, scale_in, shift_in)
    return y, s, ss


def _affine_relu(y_flat, scale_rows, shift_rows):
    R, HW = y_flat.shape
    # TODO(synk): tile the row axis (~512 rows per block) for large shapes.
    return pl.pallas_call(
        _affine_relu_kernel,
        out_shape=jax.ShapeDtypeStruct((R, HW), jnp.float32),
        grid=(1,),
        in_specs=[
            pl.BlockSpec((R, HW), lambda i: (0, 0)),
            pl.BlockSpec((R, 1), lambda i: (0, 0)),
            pl.BlockSpec((R, 1), lambda i: (0, 0)),
        ],
        out_specs=pl.BlockSpec((R, HW), lambda i: (0, 0)),
        compiler_params=pltpu.CompilerParams(
            dimension_semantics=("parallel",)),
    )(y_flat, scale_rows, shift_rows)


def _bn_scale_shift(s, ss, gamma, beta, count, eps=1e-5):
    """Fold training-mode BatchNorm batch stats into a per-channel affine."""
    total = s.sum(axis=0)[:, 0]                    # (Cout,)
    total_sq = ss.sum(axis=0)[:, 0]
    mean = total / count
    var = total_sq / count - mean * mean           # biased variance (BN training mode)
    scale = gamma * jax.lax.rsqrt(var + eps)
    shift = beta - mean * scale
    return scale, shift


def _tap_masks(H, W):
    """(9, 1, H*W) validity masks for the 3x3 taps in the flat spatial layout."""
    idx = jnp.arange(H * W, dtype=jnp.int32)
    h, w = idx // W, idx % W
    rows = []
    for di in (-1, 0, 1):
        for dj in (-1, 0, 1):
            ok = (h + di >= 0) & (h + di < H) & (w + dj >= 0) & (w + dj < W)
            rows.append(ok)
    return jnp.stack(rows).astype(jnp.float32).reshape(9, 1, H * W)


def _fold_weight(w_oihw):
    """(Cout, Cin, 3, 3) -> (Cout, 9*Cin) bf16, tap-major / channel-minor."""
    cout, cin = w_oihw.shape[0], w_oihw.shape[1]
    return jnp.transpose(w_oihw, (0, 2, 3, 1)).reshape(cout, 9 * cin).astype(jnp.bfloat16)


@jax.jit
def double_conv(x_nchw, params):
    eps = 1e-5
    N, Cin, H, W = x_nchw.shape
    HW = H * W
    Cout = params["w1"].shape[0]

    x_flat = x_nchw.reshape(N, Cin, HW)            # NCHW is already channel-major flat
    masks = _tap_masks(H, W)

    # ---- layer 1: conv (bias folded away by BN) + batch statistics ----
    y1, s1, ss1 = _conv3x3_bn_stats(
        x_flat, masks, _fold_weight(params["w1"]),
        jnp.ones((Cin, 1), jnp.float32), jnp.zeros((Cin, 1), jnp.float32),
        H=H, W=W, Cout=Cout, apply_input_act=False)
    scale1, shift1 = _bn_scale_shift(s1, ss1, params["g1"], params["be1"],
                                     float(N * HW), eps)

    # ---- layer 2: BN1+ReLU fused on the input side, conv, statistics ----
    y2, s2, ss2 = _conv3x3_bn_stats(
        y1, masks, _fold_weight(params["w2"]),
        scale1.reshape(Cout, 1), shift1.reshape(Cout, 1),
        H=H, W=W, Cout=Cout, apply_input_act=True)
    scale2, shift2 = _bn_scale_shift(s2, ss2, params["g2"], params["be2"],
                                     float(N * HW), eps)

    # ---- final BN2 + ReLU as a lane-dense elementwise pass ----
    y2_rows = y2.reshape(N * Cout, HW)
    sc_rows = jnp.tile(scale2, N).reshape(N * Cout, 1)
    sh_rows = jnp.tile(shift2, N).reshape(N * Cout, 1)
    out = _affine_relu(y2_rows, sc_rows, sh_rows)
    return out.reshape(N, Cout, H, W)


# ------------------------------ pure-JAX reference ------------------------- #

def _ref_conv_bn_relu(x, w, b, g, be, eps=1e-5):
    y = jax.lax.conv_general_dilated(
        x, w, window_strides=(1, 1), padding=((1, 1), (1, 1)),
        dimension_numbers=("NCHW", "OIHW", "NCHW"))
    y = y + b.reshape(1, -1, 1, 1)                 # reference keeps the conv bias
    mean = y.mean(axis=(0, 2, 3), keepdims=True)
    var = y.var(axis=(0, 2, 3), keepdims=True)     # biased variance (BN training mode)
    yn = (y - mean) * jax.lax.rsqrt(var + eps)
    yn = yn * g.reshape(1, -1, 1, 1) + be.reshape(1, -1, 1, 1)
    return jnp.maximum(yn, 0.0)


def _ref_double_conv(x, p):
    a1 = _ref_conv_bn_relu(x, p["w1"], p["b1"], p["g1"], p["be1"])
    return _ref_conv_bn_relu(a1, p["w2"], p["b2"], p["g2"], p["be2"])


# ----------------------------------- main ----------------------------------- #

if __name__ == "__main__":
    N, Cin, Cout, H, W = 2, 4, 8, 16, 16
    key = jax.random.PRNGKey(0)
    ks = jax.random.split(key, 9)

    x = jax.random.normal(ks[0], (N, Cin, H, W), jnp.float32)

    # PyTorch-style parameters: conv weights (Cout, Cin, 3, 3); biases are kept
    # in the dict (and used by the reference) but are exact no-ops under BN.
    params = {
        "w1": 0.1 * jax.random.normal(ks[1], (Cout, Cin, 3, 3), jnp.float32),
        "b1": 0.1 * jax.random.normal(ks[2], (Cout,), jnp.float32),
        "g1": 1.0 + 0.1 * jax.random.normal(ks[3], (Cout,), jnp.float32),
        "be1": 0.1 * jax.random.normal(ks[4], (Cout,), jnp.float32),
        "w2": 0.1 * jax.random.normal(ks[5], (Cout, Cout, 3, 3), jnp.float32),
        "b2": 0.1 * jax.random.normal(ks[6], (Cout,), jnp.float32),
        "g2": 1.0 + 0.1 * jax.random.normal(ks[7], (Cout,), jnp.float32),
        "be2": 0.1 * jax.random.normal(ks[8], (Cout,), jnp.float32),
    }

    out = jax.block_until_ready(double_conv(x, params))
    ref = _ref_double_conv(x, params)

    assert out.shape == (N, Cout, H, W)
    max_err = float(jnp.max(jnp.abs(out - ref)))
    # bf16 MXU operands vs. an all-f32 reference -> looser tolerance than pure f32.
    assert jnp.allclose(out, ref, atol=5e-2, rtol=5e-2), \
        f"mismatch vs reference (max abs err {max_err:.4e})"
    print("KERNEL_OK")
</pallas_src>

<mosaic_0001>
module attributes {stable_mosaic.version = 11 : i64} {
  func.func @_conv3x3_kernel(%arg0: i32, %arg1: memref<9x1x256xf32, #tpu.memory_space<vmem>>, %arg2: memref<1x4x256xf32, #tpu.memory_space<vmem>>, %arg3: memref<8x36xbf16, #tpu.memory_space<vmem>>, %arg4: memref<4x1xf32, #tpu.memory_space<vmem>>, %arg5: memref<4x1xf32, #tpu.memory_space<vmem>>, %arg6: memref<1x8x256xf32, #tpu.memory_space<vmem>>, %arg7: memref<1x8x1xf32, #tpu.memory_space<vmem>>, %arg8: memref<1x8x1xf32, #tpu.memory_space<vmem>>, %arg9: memref<4x512xf32, #tpu.memory_space<vmem>>, %arg10: memref<9x4x256xf32, #tpu.memory_space<vmem>>) attributes {dimension_semantics = [#tpu.dimension_semantics<parallel>], iteration_bounds = array<i64: 2>, scalar_prefetch = 0 : i64, scratch_operands = 2 : i64, tpu.core_type = #tpu.core_type<tc>, window_params = [{pipeline_mode = #tpu.pipeline_mode<synchronous>, transform_indices = @transform_0, window_bounds = array<i64: 9, 1, 256>}, {transform_indices = @transform_1, window_bounds = array<i64: 1, 4, 256>}, {pipeline_mode = #tpu.pipeline_mode<synchronous>, transform_indices = @transform_2, window_bounds = array<i64: 8, 36>}, {pipeline_mode = #tpu.pipeline_mode<synchronous>, transform_indices = @transform_3, window_bounds = array<i64: 4, 1>}, {pipeline_mode = #tpu.pipeline_mode<synchronous>, transform_indices = @transform_4, window_bounds = array<i64: 4, 1>}, {transform_indices = @transform_5, window_bounds = array<i64: 1, 8, 256>}, {transform_indices = @transform_6, window_bounds = array<i64: 1, 8, 1>}, {transform_indices = @transform_7, window_bounds = array<i64: 1, 8, 1>}]} {
    %c0 = arith.constant 0 : index
    %c0_0 = arith.constant 0 : index
    %c0_1 = arith.constant 0 : index
    %0 = vector.load %arg2[%c0, %c0_0, %c0_1] : memref<1x4x256xf32, #tpu.memory_space<vmem>>, vector<1x4x256xf32>
    %1 = vector.shape_cast %0 : vector<1x4x256xf32> to vector<4x256xf32>
    %cst = arith.constant 0.000000e+00 : f32
    %2 = vector.broadcast %cst : f32 to vector<4x512xf32>
    %c0_2 = arith.constant 0 : index
    %c0_3 = arith.constant 0 : index
    %3 = vector.load %arg9[%c0_2, %c0_3] : memref<4x512xf32, #tpu.memory_space<vmem>>, vector<4x512xf32>
    tpu.vector_store %arg9[%c0_2, %c0_3], %2 {strides = array<i32>} : memref<4x512xf32, #tpu.memory_space<vmem>>, vector<4x512xf32>,
    %c0_4 = arith.constant 0 : index
    %c128 = arith.constant 128 : index
    %4 = vector.load %arg9[%c0_4, %c128] : memref<4x512xf32, #tpu.memory_space<vmem>>, vector<4x256xf32>
    tpu.vector_store %arg9[%c0_4, %c128], %1 {strides = array<i32>} : memref<4x512xf32, #tpu.memory_space<vmem>>, vector<4x256xf32>,
    %c0_5 = arith.constant 0 : index
    %c111 = arith.constant 111 : index
    %5 = vector.load %arg9[%c0_5, %c111] : memref<4x512xf32, #tpu.memory_space<vmem>>, vector<4x256xf32>
    %c0_6 = arith.constant 0 : index
    %c0_7 = arith.constant 0 : index
    %c0_8 = arith.constant 0 : index
    %6 = vector.load %arg1[%c0_6, %c0_7, %c0_8] : memref<9x1x256xf32, #tpu.memory_space<vmem>>, vector<1x1x256xf32>
    %7 = vector.shape_cast %6 : vector<1x1x256xf32> to vector<1x256xf32>
    %8 = vector.broadcast %7 : vector<1x256xf32> to vector<4x256xf32>
    %9 = arith.mulf %5, %8 : vector<4x256xf32>
    %c0_9 = arith.constant 0 : index
    %c0_10 = arith.constant 0 : index
    %c0_11 = arith.constant 0 : index
    %10 = vector.load %arg10[%c0_9, %c0_10, %c0_11] : memref<9x4x256xf32, #tpu.memory_space<vmem>>, vector<1x4x256xf32>
    %11 = vector.shape_cast %10 : vector<1x4x256xf32> to vector<4x256xf32>
    %12 = vector.shape_cast %9 : vector<4x256xf32> to vector<1x4x256xf32>
    tpu.vector_store %arg10[%c0_9, %c0_10, %c0_11], %12 {strides = array<i32>} : memref<9x4x256xf32, #tpu.memory_space<vmem>>, vector<1x4x256xf32>,
    %c0_12 = arith.constant 0 : index
    %c112 = arith.constant 112 : index
    %13 = vector.load %arg9[%c0_12, %c112] : memref<4x512xf32, #tpu.memory_space<vmem>>, vector<4x256xf32>
    %c1 = arith.constant 1 : index
    %c0_13 = arith.constant 0 : index
    %c0_14 = arith.constant 0 : index
    %14 = vector.load %arg1[%c1, %c0_13, %c0_14] : memref<9x1x256xf32, #tpu.memory_space<vmem>>, vector<1x1x256xf32>
    %15 = vector.shape_cast %14 : vector<1x1x256xf32> to vector<1x256xf32>
    %16 = vector.broadcast %15 : vector<1x256xf32> to vector<4x256xf32>
    %17 = arith.mulf %13, %16 : vector<4x256xf32>
    %c1_15 = arith.constant 1 : index
    %c0_16 = arith.constant 0 : index
    %c0_17 = arith.constant 0 : index
    %18 = vector.load %arg10[%c1_15, %c0_16, %c0_17] : memref<9x4x256xf32, #tpu.memory_space<vmem>>, vector<1x4x256xf32>
    %19 = vector.shape_cast %18 : vector<1x4x256xf32> to vector<4x256xf32>
    %20 = vector.shape_cast %17 : vector<4x256xf32> to vector<1x4x256xf32>
    tpu.vector_store %arg10[%c1_15, %c0_16, %c0_17], %20 {strides = array<i32>} : memref<9x4x256xf32, #tpu.memory_space<vmem>>, vector<1x4x256xf32>,
    %c0_18 = arith.constant 0 : index
    %c113 = arith.constant 113 : index
    %21 = vector.load %arg9[%c0_18, %c113] : memref<4x512xf32, #tpu.memory_space<vmem>>, vector<4x256xf32>
    %c2 = arith.constant 2 : index
    %c0_19 = arith.constant 0 : index
    %c0_20 = arith.constant 0 : index
    %22 = vector.load %arg1[%c2, %c0_19, %c0_20] : memref<9x1x256xf32, #tpu.memory_space<vmem>>, vector<1x1x256xf32>
    %23 = vector.shape_cast %22 : vector<1x1x256xf32> to vector<1x256xf32>
    %24 = vector.broadcast %23 : vector<1x256xf32> to vector<4x256xf32>
    %25 = arith.mulf %21, %24 : vector<4x256xf32>
    %c2_21 = arith.constant 2 : index
    %c0_22 = arith.constant 0 : index
    %c0_23 = arith.constant 0 : index
    %26 = vector.load %arg10[%c2_21, %c0_22, %c0_23] : memref<9x4x256xf32, #tpu.memory_space<vmem>>, vector<1x4x256xf32>
    %27 = vector.shape_cast %26 : vector<1x4x256xf32> to vector<4x256xf32>
    %28 = vector.shape_cast %25 : vector<4x256xf32> to vector<1x4x256xf32>
    tpu.vector_store %arg10[%c2_21, %c0_22, %c0_23], %28 {strides = array<i32>} : memref<9x4x256xf32, #tpu.memory_space<vmem>>, vector<1x4x256xf32>,
    %c0_24 = arith.constant 0 : index
    %c127 = arith.constant 127 : index
    %29 = vector.load %arg9[%c0_24, %c127] : memref<4x512xf32, #tpu.memory_space<vmem>>, vector<4x256xf32>
    %c3 = arith.constant 3 : index
    %c0_25 = arith.constant 0 : index
    %c0_26 = arith.constant 0 : index
    %30 = vector.load %arg1[%c3, %c0_25, %c0_26] : memref<9x1x256xf32, #tpu.memory_space<vmem>>, vector<1x1x256xf32>
    %31 = vector.shape_cast %30 : vector<1x1x256xf32> to vector<1x256xf32>
    %32 = vector.broadcast %31 : vector<1x256xf32> to vector<4x256xf32>
    %33 = arith.mulf %29, %32 : vector<4x256xf32>
    %c3_27 = arith.constant 3 : index
    %c0_28 = arith.constant 0 : index
    %c0_29 = arith.constant 0 : index
    %34 = vector.load %arg10[%c3_27, %c0_28, %c0_29] : memref<9x4x256xf32, #tpu.memory_space<vmem>>, vector<1x4x256xf32>
    %35 = vector.shape_cast %34 : vector<1x4x256xf32> to vector<4x256xf32>
    %36 = vector.shape_cast %33 : vector<4x256xf32> to vector<1x4x256xf32>
    tpu.vector_store %arg10[%c3_27, %c0_28, %c0_29], %36 {strides = array<i32>} : memref<9x4x256xf32, #tpu.memory_space<vmem>>, vector<1x4x256xf32>,
    %c0_30 = arith.constant 0 : index
    %c128_31 = arith.constant 128 : index
    %37 = vector.load %arg9[%c0_30, %c128_31] : memref<4x512xf32, #tpu.memory_space<vmem>>, vector<4x256xf32>
    %c4 = arith.constant 4 : index
    %c0_32 = arith.constant 0 : index
    %c0_33 = arith.constant 0 : index
    %38 = vector.load %arg1[%c4, %c0_32, %c0_33] : memref<9x1x256xf32, #tpu.memory_space<vmem>>, vector<1x1x256xf32>
    %39 = vector.shape_cast %38 : vector<1x1x256xf32> to vector<1x256xf32>
    %40 = vector.broadcast %39 : vector<1x256xf32> to vector<4x256xf32>
    %41 = arith.mulf %37, %40 : vector<4x256xf32>
    %c4_34 = arith.constant 4 : index
    %c0_35 = arith.constant 0 : index
    %c0_36 = arith.constant 0 : index
    %42 = vector.load %arg10[%c4_34, %c0_35, %c0_36] : memref<9x4x256xf32, #tpu.memory_space<vmem>>, vector<1x4x256xf32>
    %43 = vector.shape_cast %42 : vector<1x4x256xf32> to vector<4x256xf32>
    %44 = vector.shape_cast %41 : vector<4x256xf32> to vector<1x4x256xf32>
    tpu.vector_store %arg10[%c4_34, %c0_35, %c0_36], %44 {strides = array<i32>} : memref<9x4x256xf32, #tpu.memory_space<vmem>>, vector<1x4x256xf32>,
    %c0_37 = arith.constant 0 : index
    %c129 = arith.constant 129 : index
    %45 = vector.load %arg9[%c0_37, %c129] : memref<4x512xf32, #tpu.memory_space<vmem>>, vector<4x256xf32>
    %c5 = arith.constant 5 : index
    %c0_38 = arith.constant 0 : index
    %c0_39 = arith.constant 0 : index
    %46 = vector.load %arg1[%c5, %c0_38, %c0_39] : memref<9x1x256xf32, #tpu.memory_space<vmem>>, vector<1x1x256xf32>
    %47 = vector.shape_cast %46 : vector<1x1x256xf32> to vector<1x256xf32>
    %48 = vector.broadcast %47 : vector<1x256xf32> to vector<4x256xf32>
    %49 = arith.mulf %45, %48 : vector<4x256xf32>
    %c5_40 = arith.constant 5 : index
    %c0_41 = arith.constant 0 : index
    %c0_42 = arith.constant 0 : index
    %50 = vector.load %arg10[%c5_40, %c0_41, %c0_42] : memref<9x4x256xf32, #tpu.memory_space<vmem>>, vector<1x4x256xf32>
    %51 = vector.shape_cast %50 : vector<1x4x256xf32> to vector<4x256xf32>
    %52 = vector.shape_cast %49 : vector<4x256xf32> to vector<1x4x256xf32>
    tpu.vector_store %arg10[%c5_40, %c0_41, %c0_42], %52 {strides = array<i32>} : memref<9x4x256xf32, #tpu.memory_space<vmem>>, vector<1x4x256xf32>,
    %c0_43 = arith.constant 0 : index
    %c143 = arith.constant 143 : index
    %53 = vector.load %arg9[%c0_43, %c143] : memref<4x512xf32, #tpu.memory_space<vmem>>, vector<4x256xf32>
    %c6 = arith.constant 6 : index
    %c0_44 = arith.constant 0 : index
    %c0_45 = arith.constant 0 : index
    %54 = vector.load %arg1[%c6, %c0_44, %c0_45] : memref<9x1x256xf32, #tpu.memory_space<vmem>>, vector<1x1x256xf32>
    %55 = vector.shape_cast %54 : vector<1x1x256xf32> to vector<1x256xf32>
    %56 = vector.broadcast %55 : vector<1x256xf32> to vector<4x256xf32>
    %57 = arith.mulf %53, %56 : vector<4x256xf32>
    %c6_46 = arith.constant 6 : index
    %c0_47 = arith.constant 0 : index
    %c0_48 = arith.constant 0 : index
    %58 = vector.load %arg10[%c6_46, %c0_47, %c0_48] : memref<9x4x256xf32, #tpu.memory_space<vmem>>, vector<1x4x256xf32>
    %59 = vector.shape_cast %58 : vector<1x4x256xf32> to vector<4x256xf32>
    %60 = vector.shape_cast %57 : vector<4x256xf32> to vector<1x4x256xf32>
    tpu.vector_store %arg10[%c6_46, %c0_47, %c0_48], %60 {strides = array<i32>} : memref<9x4x256xf32, #tpu.memory_space<vmem>>, vector<1x4x256xf32>,
    %c0_49 = arith.constant 0 : index
    %c144 = arith.constant 144 : index
    %61 = vector.load %arg9[%c0_49, %c144] : memref<4x512xf32, #tpu.memory_space<vmem>>, vector<4x256xf32>
    %c7 = arith.constant 7 : index
    %c0_50 = arith.constant 0 : index
    %c0_51 = arith.constant 0 : index
    %62 = vector.load %arg1[%c7, %c0_50, %c0_51] : memref<9x1x256xf32, #tpu.memory_space<vmem>>, vector<1x1x256xf32>
    %63 = vector.shape_cast %62 : vector<1x1x256xf32> to vector<1x256xf32>
    %64 = vector.broadcast %63 : vector<1x256xf32> to vector<4x256xf32>
    %65 = arith.mulf %61, %64 : vector<4x256xf32>
    %c7_52 = arith.constant 7 : index
    %c0_53 = arith.constant 0 : index
    %c0_54 = arith.constant 0 : index
    %66 = vector.load %arg10[%c7_52, %c0_53, %c0_54] : memref<9x4x256xf32, #tpu.memory_space<vmem>>, vector<1x4x256xf32>
    %67 = vector.shape_cast %66 : vector<1x4x256xf32> to vector<4x256xf32>
    %68 = vector.shape_cast %65 : vector<4x256xf32> to vector<1x4x256xf32>
    tpu.vector_store %arg10[%c7_52, %c0_53, %c0_54], %68 {strides = array<i32>} : memref<9x4x256xf32, #tpu.memory_space<vmem>>, vector<1x4x256xf32>,
    %c0_55 = arith.constant 0 : index
    %c145 = arith.constant 145 : index
    %69 = vector.load %arg9[%c0_55, %c145] : memref<4x512xf32, #tpu.memory_space<vmem>>, vector<4x256xf32>
    %c8 = arith.constant 8 : index
    %c0_56 = arith.constant 0 : index
    %c0_57 = arith.constant 0 : index
    %70 = vector.load %arg1[%c8, %c0_56, %c0_57] : memref<9x1x256xf32, #tpu.memory_space<vmem>>, vector<1x1x256xf32>
    %71 = vector.shape_cast %70 : vector<1x1x256xf32> to vector<1x256xf32>
    %72 = vector.broadcast %71 : vector<1x256xf32> to vector<4x256xf32>
    %73 = arith.mulf %69, %72 : vector<4x256xf32>
    %c8_58 = arith.constant 8 : index
    %c0_59 = arith.constant 0 : index
    %c0_60 = arith.constant 0 : index
    %74 = vector.load %arg10[%c8_58, %c0_59, %c0_60] : memref<9x4x256xf32, #tpu.memory_space<vmem>>, vector<1x4x256xf32>
    %75 = vector.shape_cast %74 : vector<1x4x256xf32> to vector<4x256xf32>
    %76 = vector.shape_cast %73 : vector<4x256xf32> to vector<1x4x256xf32>
    tpu.vector_store %arg10[%c8_58, %c0_59, %c0_60], %76 {strides = array<i32>} : memref<9x4x256xf32, #tpu.memory_space<vmem>>, vector<1x4x256xf32>,
    %c0_61 = arith.constant 0 : index
    %c0_62 = arith.constant 0 : index
    %c0_63 = arith.constant 0 : index
    %77 = vector.load %arg10[%c0_61, %c0_62, %c0_63] : memref<9x4x256xf32, #tpu.memory_space<vmem>>, vector<9x4x256xf32>
    %78 = vector.shape_cast %77 : vector<9x4x256xf32> to vector<36x256xf32>
    %79 = arith.truncf %78 : vector<36x256xf32> to vector<36x256xbf16>
    %c0_64 = arith.constant 0 : index
    %c0_65 = arith.constant 0 : index
    %80 = vector.load %arg3[%c0_64, %c0_65] : memref<8x36xbf16, #tpu.memory_space<vmem>>, vector<8x36xbf16>
    %cst_66 = arith.constant dense<0.000000e+00> : vector<8x256xf32>
    %81 = tpu.matmul %80, %79, %cst_66 {dimension_numbers = #tpu.dot_dimension_numbers<[1], [0], [0], [1], [0, 0, 1, 1], [], []>} : vector<8x36xbf16>, vector<36x256xbf16>, vector<8x256xf32> -> vector<8x256xf32>
    %c0_67 = arith.constant 0 : index
    %c0_68 = arith.constant 0 : index
    %c0_69 = arith.constant 0 : index
    %82 = vector.load %arg6[%c0_67, %c0_68, %c0_69] : memref<1x8x256xf32, #tpu.memory_space<vmem>>, vector<1x8x256xf32>
    %83 = vector.shape_cast %82 : vector<1x8x256xf32> to vector<8x256xf32>
    %84 = vector.shape_cast %81 : vector<8x256xf32> to vector<1x8x256xf32>
    tpu.vector_store %arg6[%c0_67, %c0_68, %c0_69], %84 {strides = array<i32>} : memref<1x8x256xf32, #tpu.memory_space<vmem>>, vector<1x8x256xf32>,
    %cst_70 = arith.constant dense<0.000000e+00> : vector<8xf32>
    %85 = vector.multi_reduction <add>, %81, %cst_70 [1] : vector<8x256xf32> to vector<8xf32>
    %86 = vector.shape_cast %85 : vector<8xf32> to vector<8x1xf32>
    %c0_71 = arith.constant 0 : index
    %c0_72 = arith.constant 0 : index
    %c0_73 = arith.constant 0 : index
    %87 = vector.load %arg7[%c0_71, %c0_72, %c0_73] : memref<1x8x1xf32, #tpu.memory_space<vmem>>, vector<1x8x1xf32>
    %88 = vector.shape_cast %87 : vector<1x8x1xf32> to vector<8x1xf32>
    %89 = vector.shape_cast %86 : vector<8x1xf32> to vector<1x8x1xf32>
    tpu.vector_store %arg7[%c0_71, %c0_72, %c0_73], %89 {strides = array<i32>} : memref<1x8x1xf32, #tpu.memory_space<vmem>>, vector<1x8x1xf32>,
    %90 = arith.mulf %81, %81 : vector<8x256xf32>
    %cst_74 = arith.constant dense<0.000000e+00> : vector<8xf32>
    %91 = vector.multi_reduction <add>, %90, %cst_74 [1] : vector<8x256xf32> to vector<8xf32>
    %92 = vector.shape_cast %91 : vector<8xf32> to vector<8x1xf32>
    %c0_75 = arith.constant 0 : index
    %c0_76 = arith.constant 0 : index
    %c0_77 = arith.constant 0 : index
    %93 = vector.load %arg8[%c0_75, %c0_76, %c0_77] : memref<1x8x1xf32, #tpu.memory_space<vmem>>, vector<1x8x1xf32>
    %94 = vector.shape_cast %93 : vector<1x8x1xf32> to vector<8x1xf32>
    %95 = vector.shape_cast %92 : vector<8x1xf32> to vector<1x8x1xf32>
    tpu.vector_store %arg8[%c0_75, %c0_76, %c0_77], %95 {strides = array<i32>} : memref<1x8x1xf32, #tpu.memory_space<vmem>>, vector<1x8x1xf32>,
    return
  }
  func.func @transform_0(%arg0: i32) -> (i32, i32, i32) {
    %c0_i32 = arith.constant 0 : i32
    %c0_i32_0 = arith.constant 0 : i32
    %c0_i32_1 = arith.constant 0 : i32
    %c0_i32_2 = arith.constant 0 : i32
    return %c0_i32, %c0_i32_0, %c0_i32_1 : i32, i32, i32
  }
  func.func @transform_1(%arg0: i32) -> (i32, i32, i32) {
    %c0_i32 = arith.constant 0 : i32
    %c0_i32_0 = arith.constant 0 : i32
    %c0_i32_1 = arith.constant 0 : i32
    return %arg0, %c0_i32, %c0_i32_0 : i32, i32, i32
  }
  func.func @transform_2(%arg0: i32) -> (i32, i32) {
    %c0_i32 = arith.constant 0 : i32
    %c0_i32_0 = arith.constant 0 : i32
    %c0_i32_1 = arith.constant 0 : i32
    return %c0_i32, %c0_i32_0 : i32, i32
  }
  func.func @transform_3(%arg0: i32) -> (i32, i32) {
    %c0_i32 = arith.constant 0 : i32
    %c0_i32_0 = arith.constant 0 : i32
    %c0_i32_1 = arith.constant 0 : i32
    return %c0_i32, %c0_i32_0 : i32, i32
  }
  func.func @transform_4(%arg0: i32) -> (i32, i32) {
    %c0_i32 = arith.constant 0 : i32
    %c0_i32_0 = arith.constant 0 : i32
    %c0_i32_1 = arith.constant 0 : i32
    return %c0_i32, %c0_i32_0 : i32, i32
  }
  func.func @transform_5(%arg0: i32) -> (i32, i32, i32) {
    %c0_i32 = arith.constant 0 : i32
    %c0_i32_0 = arith.constant 0 : i32
    %c0_i32_1 = arith.constant 0 : i32
    return %arg0, %c0_i32, %c0_i32_0 : i32, i32, i32
  }
  func.func @transform_6(%arg0: i32) -> (i32, i32, i32) {
    %c0_i32 = arith.constant 0 : i32
    %c0_i32_0 = arith.constant 0 : i32
    %c0_i32_1 = arith.constant 0 : i32
    return %arg0, %c0_i32, %c0_i32_0 : i32, i32, i32
  }
  func.func @transform_7(%arg0: i32) -> (i32, i32, i32) {
    %c0_i32 = arith.constant 0 : i32
    %c0_i32_0 = arith.constant 0 : i32
    %c0_i32_1 = arith.constant 0 : i32
    return %arg0, %c0_i32, %c0_i32_0 : i32, i32, i32
  }
}

module attributes {stable_mosaic.version = 11 : i64} {
  func.func @_affine_relu_kernel(%arg0: i32, %arg1: memref<16x256xf32, #tpu.memory_space<vmem>>, %arg2: memref<16x1xf32, #tpu.memory_space<vmem>>, %arg3: memref<16x1xf32, #tpu.memory_space<vmem>>, %arg4: memref<16x256xf32, #tpu.memory_space<vmem>>) attributes {dimension_semantics = [#tpu.dimension_semantics<parallel>], iteration_bounds = array<i64: 1>, scalar_prefetch = 0 : i64, scratch_operands = 0 : i64, tpu.core_type = #tpu.core_type<tc>, window_params = [{pipeline_mode = #tpu.pipeline_mode<synchronous>, transform_indices = @transform_0, window_bounds = array<i64: 16, 256>}, {pipeline_mode = #tpu.pipeline_mode<synchronous>, transform_indices = @transform_1, window_bounds = array<i64: 16, 1>}, {pipeline_mode = #tpu.pipeline_mode<synchronous>, transform_indices = @transform_2, window_bounds = array<i64: 16, 1>}, {pipeline_mode = #tpu.pipeline_mode<synchronous>, transform_indices = @transform_3, window_bounds = array<i64: 16, 256>}]} {
    %c0 = arith.constant 0 : index
    %c0_0 = arith.constant 0 : index
    %0 = vector.load %arg1[%c0, %c0_0] : memref<16x256xf32, #tpu.memory_space<vmem>>, vector<16x256xf32>
    %c0_1 = arith.constant 0 : index
    %c0_2 = arith.constant 0 : index
    %1 = vector.load %arg2[%c0_1, %c0_2] : memref<16x1xf32, #tpu.memory_space<vmem>>, vector<16x1xf32>
    %2 = vector.broadcast %1 : vector<16x1xf32> to vector<16x256xf32>
    %3 = arith.mulf %0, %2 : vector<16x256xf32>
    %c0_3 = arith.constant 0 : index
    %c0_4 = arith.constant 0 : index
    %4 = vector.load %arg3[%c0_3, %c0_4] : memref<16x1xf32, #tpu.memory_space<vmem>>, vector<16x1xf32>
    %5 = vector.broadcast %4 : vector<16x1xf32> to vector<16x256xf32>
    %6 = arith.addf %3, %5 : vector<16x256xf32>
    %cst = arith.constant 0.000000e+00 : f32
    %7 = vector.broadcast %cst : f32 to vector<16x256xf32>
    %8 = arith.maximumf %6, %7 : vector<16x256xf32>
    %c0_5 = arith.constant 0 : index
    %c0_6 = arith.constant 0 : index
    %9 = vector.load %arg4[%c0_5, %c0_6] : memref<16x256xf32, #tpu.memory_space<vmem>>, vector<16x256xf32>
    tpu.vector_store %arg4[%c0_5, %c0_6], %8 {strides = array<i32>} : memref<16x256xf32, #tpu.memory_space<vmem>>, vector<16x256xf32>,
    return
  }
  func.func @transform_0(%arg0: i32) -> (i32, i32) {
    %c0_i32 = arith.constant 0 : i32
    %c0_i32_0 = arith.constant 0 : i32
    %c0_i32_1 = arith.constant 0 : i32
    return %c0_i32, %c0_i32_0 : i32, i32
  }
  func.func @transform_1(%arg0: i32) -> (i32, i32) {
    %c0_i32 = arith.constant 0 : i32
    %c0_i32_0 = arith.constant 0 : i32
    %c0_i32_1 = arith.constant 0 : i32
    return %c0_i32, %c0_i32_0 : i32, i32
  }
  func.func @transform_2(%arg0: i32) -> (i32, i32) {
    %c0_i32 = arith.constant 0 : i32
    %c0_i32_0 = arith.constant 0 : i32
    %c0_i32_1 = arith.constant 0 : i32
    return %c0_i32, %c0_i32_0 : i32, i32
  }
  func.func @transform_3(%arg0: i32) -> (i32, i32) {
    %c0_i32 = arith.constant 0 : i32
    %c0_i32_0 = arith.constant 0 : i32
    %c0_i32_1 = arith.constant 0 : i32
    return %c0_i32, %c0_i32_0 : i32, i32
  }
}

module attributes {stable_mosaic.version = 11 : i64} {
  func.func @_conv3x3_kernel(%arg0: i32, %arg1: memref<9x1x256xf32, #tpu.memory_space<vmem>>, %arg2: memref<1x8x256xf32, #tpu.memory_space<vmem>>, %arg3: memref<8x72xbf16, #tpu.memory_space<vmem>>, %arg4: memref<8x1xf32, #tpu.memory_space<vmem>>, %arg5: memref<8x1xf32, #tpu.memory_space<vmem>>, %arg6: memref<1x8x256xf32, #tpu.memory_space<vmem>>, %arg7: memref<1x8x1xf32, #tpu.memory_space<vmem>>, %arg8: memref<1x8x1xf32, #tpu.memory_space<vmem>>, %arg9: memref<8x512xf32, #tpu.memory_space<vmem>>, %arg10: memref<9x8x256xf32, #tpu.memory_space<vmem>>) attributes {dimension_semantics = [#tpu.dimension_semantics<parallel>], iteration_bounds = array<i64: 2>, scalar_prefetch = 0 : i64, scratch_operands = 2 : i64, tpu.core_type = #tpu.core_type<tc>, window_params = [{pipeline_mode = #tpu.pipeline_mode<synchronous>, transform_indices = @transform_0, window_bounds = array<i64: 9, 1, 256>}, {transform_indices = @transform_1, window_bounds = array<i64: 1, 8, 256>}, {pipeline_mode = #tpu.pipeline_mode<synchronous>, transform_indices = @transform_2, window_bounds = array<i64: 8, 72>}, {pipeline_mode = #tpu.pipeline_mode<synchronous>, transform_indices = @transform_3, window_bounds = array<i64: 8, 1>}, {pipeline_mode = #tpu.pipeline_mode<synchronous>, transform_indices = @transform_4, window_bounds = array<i64: 8, 1>}, {transform_indices = @transform_5, window_bounds = array<i64: 1, 8, 256>}, {transform_indices = @transform_6, window_bounds = array<i64: 1, 8, 1>}, {transform_indices = @transform_7, window_bounds = array<i64: 1, 8, 1>}]} {
    %c0 = arith.constant 0 : index
    %c0_0 = arith.constant 0 : index
    %c0_1 = arith.constant 0 : index
    %0 = vector.load %arg2[%c0, %c0_0, %c0_1] : memref<1x8x256xf32, #tpu.memory_space<vmem>>, vector<1x8x256xf32>
    %1 = vector.shape_cast %0 : vector<1x8x256xf32> to vector<8x256xf32>
    %c0_2 = arith.constant 0 : index
    %c0_3 = arith.constant 0 : index
    %2 = vector.load %arg4[%c0_2, %c0_3] : memref<8x1xf32, #tpu.memory_space<vmem>>, vector<8x1xf32>
    %3 = vector.broadcast %2 : vector<8x1xf32> to vector<8x256xf32>
    %4 = arith.mulf %1, %3 : vector<8x256xf32>
    %c0_4 = arith.constant 0 : index
    %c0_5 = arith.constant 0 : index
    %5 = vector.load %arg5[%c0_4, %c0_5] : memref<8x1xf32, #tpu.memory_space<vmem>>, vector<8x1xf32>
    %6 = vector.broadcast %5 : vector<8x1xf32> to vector<8x256xf32>
    %7 = arith.addf %4, %6 : vector<8x256xf32>
    %cst = arith.constant 0.000000e+00 : f32
    %8 = vector.broadcast %cst : f32 to vector<8x256xf32>
    %9 = arith.maximumf %7, %8 : vector<8x256xf32>
    %cst_6 = arith.constant 0.000000e+00 : f32
    %10 = vector.broadcast %cst_6 : f32 to vector<8x512xf32>
    %c0_7 = arith.constant 0 : index
    %c0_8 = arith.constant 0 : index
    %11 = vector.load %arg9[%c0_7, %c0_8] : memref<8x512xf32, #tpu.memory_space<vmem>>, vector<8x512xf32>
    tpu.vector_store %arg9[%c0_7, %c0_8], %10 {strides = array<i32>} : memref<8x512xf32, #tpu.memory_space<vmem>>, vector<8x512xf32>,
    %c0_9 = arith.constant 0 : index
    %c128 = arith.constant 128 : index
    %12 = vector.load %arg9[%c0_9, %c128] : memref<8x512xf32, #tpu.memory_space<vmem>>, vector<8x256xf32>
    tpu.vector_store %arg9[%c0_9, %c128], %9 {strides = array<i32>} : memref<8x512xf32, #tpu.memory_space<vmem>>, vector<8x256xf32>,
    %c0_10 = arith.constant 0 : index
    %c111 = arith.constant 111 : index
    %13 = vector.load %arg9[%c0_10, %c111] : memref<8x512xf32, #tpu.memory_space<vmem>>, vector<8x256xf32>
    %c0_11 = arith.constant 0 : index
    %c0_12 = arith.constant 0 : index
    %c0_13 = arith.constant 0 : index
    %14 = vector.load %arg1[%c0_11, %c0_12, %c0_13] : memref<9x1x256xf32, #tpu.memory_space<vmem>>, vector<1x1x256xf32>
    %15 = vector.shape_cast %14 : vector<1x1x256xf32> to vector<1x256xf32>
    %16 = vector.broadcast %15 : vector<1x256xf32> to vector<8x256xf32>
    %17 = arith.mulf %13, %16 : vector<8x256xf32>
    %c0_14 = arith.constant 0 : index
    %c0_15 = arith.constant 0 : index
    %c0_16 = arith.constant 0 : index
    %18 = vector.load %arg10[%c0_14, %c0_15, %c0_16] : memref<9x8x256xf32, #tpu.memory_space<vmem>>, vector<1x8x256xf32>
    %19 = vector.shape_cast %18 : vector<1x8x256xf32> to vector<8x256xf32>
    %20 = vector.shape_cast %17 : vector<8x256xf32> to vector<1x8x256xf32>
    tpu.vector_store %arg10[%c0_14, %c0_15, %c0_16], %20 {strides = array<i32>} : memref<9x8x256xf32, #tpu.memory_space<vmem>>, vector<1x8x256xf32>,
    %c0_17 = arith.constant 0 : index
    %c112 = arith.constant 112 : index
    %21 = vector.load %arg9[%c0_17, %c112] : memref<8x512xf32, #tpu.memory_space<vmem>>, vector<8x256xf32>
    %c1 = arith.constant 1 : index
    %c0_18 = arith.constant 0 : index
    %c0_19 = arith.constant 0 : index
    %22 = vector.load %arg1[%c1, %c0_18, %c0_19] : memref<9x1x256xf32, #tpu.memory_space<vmem>>, vector<1x1x256xf32>
    %23 = vector.shape_cast %22 : vector<1x1x256xf32> to vector<1x256xf32>
    %24 = vector.broadcast %23 : vector<1x256xf32> to vector<8x256xf32>
    %25 = arith.mulf %21, %24 : vector<8x256xf32>
    %c1_20 = arith.constant 1 : index
    %c0_21 = arith.constant 0 : index
    %c0_22 = arith.constant 0 : index
    %26 = vector.load %arg10[%c1_20, %c0_21, %c0_22] : memref<9x8x256xf32, #tpu.memory_space<vmem>>, vector<1x8x256xf32>
    %27 = vector.shape_cast %26 : vector<1x8x256xf32> to vector<8x256xf32>
    %28 = vector.shape_cast %25 : vector<8x256xf32> to vector<1x8x256xf32>
    tpu.vector_store %arg10[%c1_20, %c0_21, %c0_22], %28 {strides = array<i32>} : memref<9x8x256xf32, #tpu.memory_space<vmem>>, vector<1x8x256xf32>,
    %c0_23 = arith.constant 0 : index
    %c113 = arith.constant 113 : index
    %29 = vector.load %arg9[%c0_23, %c113] : memref<8x512xf32, #tpu.memory_space<vmem>>, vector<8x256xf32>
    %c2 = arith.constant 2 : index
    %c0_24 = arith.constant 0 : index
    %c0_25 = arith.constant 0 : index
    %30 = vector.load %arg1[%c2, %c0_24, %c0_25] : memref<9x1x256xf32, #tpu.memory_space<vmem>>, vector<1x1x256xf32>
    %31 = vector.shape_cast %30 : vector<1x1x256xf32> to vector<1x256xf32>
    %32 = vector.broadcast %31 : vector<1x256xf32> to vector<8x256xf32>
    %33 = arith.mulf %29, %32 : vector<8x256xf32>
    %c2_26 = arith.constant 2 : index
    %c0_27 = arith.constant 0 : index
    %c0_28 = arith.constant 0 : index
    %34 = vector.load %arg10[%c2_26, %c0_27, %c0_28] : memref<9x8x256xf32, #tpu.memory_space<vmem>>, vector<1x8x256xf32>
    %35 = vector.shape_cast %34 : vector<1x8x256xf32> to vector<8x256xf32>
    %36 = vector.shape_cast %33 : vector<8x256xf32> to vector<1x8x256xf32>
    tpu.vector_store %arg10[%c2_26, %c0_27, %c0_28], %36 {strides = array<i32>} : memref<9x8x256xf32, #tpu.memory_space<vmem>>, vector<1x8x256xf32>,
    %c0_29 = arith.constant 0 : index
    %c127 = arith.constant 127 : index
    %37 = vector.load %arg9[%c0_29, %c127] : memref<8x512xf32, #tpu.memory_space<vmem>>, vector<8x256xf32>
    %c3 = arith.constant 3 : index
    %c0_30 = arith.constant 0 : index
    %c0_31 = arith.constant 0 : index
    %38 = vector.load %arg1[%c3, %c0_30, %c0_31] : memref<9x1x256xf32, #tpu.memory_space<vmem>>, vector<1x1x256xf32>
    %39 = vector.shape_cast %38 : vector<1x1x256xf32> to vector<1x256xf32>
    %40 = vector.broadcast %39 : vector<1x256xf32> to vector<8x256xf32>
    %41 = arith.mulf %37, %40 : vector<8x256xf32>
    %c3_32 = arith.constant 3 : index
    %c0_33 = arith.constant 0 : index
    %c0_34 = arith.constant 0 : index
    %42 = vector.load %arg10[%c3_32, %c0_33, %c0_34] : memref<9x8x256xf32, #tpu.memory_space<vmem>>, vector<1x8x256xf32>
    %43 = vector.shape_cast %42 : vector<1x8x256xf32> to vector<8x256xf32>
    %44 = vector.shape_cast %41 : vector<8x256xf32> to vector<1x8x256xf32>
    tpu.vector_store %arg10[%c3_32, %c0_33, %c0_34], %44 {strides = array<i32>} : memref<9x8x256xf32, #tpu.memory_space<vmem>>, vector<1x8x256xf32>,
    %c0_35 = arith.constant 0 : index
    %c128_36 = arith.constant 128 : index
    %45 = vector.load %arg9[%c0_35, %c128_36] : memref<8x512xf32, #tpu.memory_space<vmem>>, vector<8x256xf32>
    %c4 = arith.constant 4 : index
    %c0_37 = arith.constant 0 : index
    %c0_38 = arith.constant 0 : index
    %46 = vector.load %arg1[%c4, %c0_37, %c0_38] : memref<9x1x256xf32, #tpu.memory_space<vmem>>, vector<1x1x256xf32>
    %47 = vector.shape_cast %46 : vector<1x1x256xf32> to vector<1x256xf32>
    %48 = vector.broadcast %47 : vector<1x256xf32> to vector<8x256xf32>
    %49 = arith.mulf %45, %48 : vector<8x256xf32>
    %c4_39 = arith.constant 4 : index
    %c0_40 = arith.constant 0 : index
    %c0_41 = arith.constant 0 : index
    %50 = vector.load %arg10[%c4_39, %c0_40, %c0_41] : memref<9x8x256xf32, #tpu.memory_space<vmem>>, vector<1x8x256xf32>
    %51 = vector.shape_cast %50 : vector<1x8x256xf32> to vector<8x256xf32>
    %52 = vector.shape_cast %49 : vector<8x256xf32> to vector<1x8x256xf32>
    tpu.vector_store %arg10[%c4_39, %c0_40, %c0_41], %52 {strides = array<i32>} : memref<9x8x256xf32, #tpu.memory_space<vmem>>, vector<1x8x256xf32>,
    %c0_42 = arith.constant 0 : index
    %c129 = arith.constant 129 : index
    %53 = vector.load %arg9[%c0_42, %c129] : memref<8x512xf32, #tpu.memory_space<vmem>>, vector<8x256xf32>
    %c5 = arith.constant 5 : index
    %c0_43 = arith.constant 0 : index
    %c0_44 = arith.constant 0 : index
    %54 = vector.load %arg1[%c5, %c0_43, %c0_44] : memref<9x1x256xf32, #tpu.memory_space<vmem>>, vector<1x1x256xf32>
    %55 = vector.shape_cast %54 : vector<1x1x256xf32> to vector<1x256xf32>
    %56 = vector.broadcast %55 : vector<1x256xf32> to vector<8x256xf32>
    %57 = arith.mulf %53, %56 : vector<8x256xf32>
    %c5_45 = arith.constant 5 : index
    %c0_46 = arith.constant 0 : index
    %c0_47 = arith.constant 0 : index
    %58 = vector.load %arg10[%c5_45, %c0_46, %c0_47] : memref<9x8x256xf32, #tpu.memory_space<vmem>>, vector<1x8x256xf32>
    %59 = vector.shape_cast %58 : vector<1x8x256xf32> to vector<8x256xf32>
    %60 = vector.shape_cast %57 : vector<8x256xf32> to vector<1x8x256xf32>
    tpu.vector_store %arg10[%c5_45, %c0_46, %c0_47], %60 {strides = array<i32>} : memref<9x8x256xf32, #tpu.memory_space<vmem>>, vector<1x8x256xf32>,
    %c0_48 = arith.constant 0 : index
    %c143 = arith.constant 143 : index
    %61 = vector.load %arg9[%c0_48, %c143] : memref<8x512xf32, #tpu.memory_space<vmem>>, vector<8x256xf32>
    %c6 = arith.constant 6 : index
    %c0_49 = arith.constant 0 : index
    %c0_50 = arith.constant 0 : index
    %62 = vector.load %arg1[%c6, %c0_49, %c0_50] : memref<9x1x256xf32, #tpu.memory_space<vmem>>, vector<1x1x256xf32>
    %63 = vector.shape_cast %62 : vector<1x1x256xf32> to vector<1x256xf32>
    %64 = vector.broadcast %63 : vector<1x256xf32> to vector<8x256xf32>
    %65 = arith.mulf %61, %64 : vector<8x256xf32>
    %c6_51 = arith.constant 6 : index
    %c0_52 = arith.constant 0 : index
    %c0_53 = arith.constant 0 : index
    %66 = vector.load %arg10[%c6_51, %c0_52, %c0_53] : memref<9x8x256xf32, #tpu.memory_space<vmem>>, vector<1x8x256xf32>
    %67 = vector.shape_cast %66 : vector<1x8x256xf32> to vector<8x256xf32>
    %68 = vector.shape_cast %65 : vector<8x256xf32> to vector<1x8x256xf32>
    tpu.vector_store %arg10[%c6_51, %c0_52, %c0_53], %68 {strides = array<i32>} : memref<9x8x256xf32, #tpu.memory_space<vmem>>, vector<1x8x256xf32>,
    %c0_54 = arith.constant 0 : index
    %c144 = arith.constant 144 : index
    %69 = vector.load %arg9[%c0_54, %c144] : memref<8x512xf32, #tpu.memory_space<vmem>>, vector<8x256xf32>
    %c7 = arith.constant 7 : index
    %c0_55 = arith.constant 0 : index
    %c0_56 = arith.constant 0 : index
    %70 = vector.load %arg1[%c7, %c0_55, %c0_56] : memref<9x1x256xf32, #tpu.memory_space<vmem>>, vector<1x1x256xf32>
    %71 = vector.shape_cast %70 : vector<1x1x256xf32> to vector<1x256xf32>
    %72 = vector.broadcast %71 : vector<1x256xf32> to vector<8x256xf32>
    %73 = arith.mulf %69, %72 : vector<8x256xf32>
    %c7_57 = arith.constant 7 : index
    %c0_58 = arith.constant 0 : index
    %c0_59 = arith.constant 0 : index
    %74 = vector.load %arg10[%c7_57, %c0_58, %c0_59] : memref<9x8x256xf32, #tpu.memory_space<vmem>>, vector<1x8x256xf32>
    %75 = vector.shape_cast %74 : vector<1x8x256xf32> to vector<8x256xf32>
    %76 = vector.shape_cast %73 : vector<8x256xf32> to vector<1x8x256xf32>
    tpu.vector_store %arg10[%c7_57, %c0_58, %c0_59], %76 {strides = array<i32>} : memref<9x8x256xf32, #tpu.memory_space<vmem>>, vector<1x8x256xf32>,
    %c0_60 = arith.constant 0 : index
    %c145 = arith.constant 145 : index
    %77 = vector.load %arg9[%c0_60, %c145] : memref<8x512xf32, #tpu.memory_space<vmem>>, vector<8x256xf32>
    %c8 = arith.constant 8 : index
    %c0_61 = arith.constant 0 : index
    %c0_62 = arith.constant 0 : index
    %78 = vector.load %arg1[%c8, %c0_61, %c0_62] : memref<9x1x256xf32, #tpu.memory_space<vmem>>, vector<1x1x256xf32>
    %79 = vector.shape_cast %78 : vector<1x1x256xf32> to vector<1x256xf32>
    %80 = vector.broadcast %79 : vector<1x256xf32> to vector<8x256xf32>
    %81 = arith.mulf %77, %80 : vector<8x256xf32>
    %c8_63 = arith.constant 8 : index
    %c0_64 = arith.constant 0 : index
    %c0_65 = arith.constant 0 : index
    %82 = vector.load %arg10[%c8_63, %c0_64, %c0_65] : memref<9x8x256xf32, #tpu.memory_space<vmem>>, vector<1x8x256xf32>
    %83 = vector.shape_cast %82 : vector<1x8x256xf32> to vector<8x256xf32>
    %84 = vector.shape_cast %81 : vector<8x256xf32> to vector<1x8x256xf32>
    tpu.vector_store %arg10[%c8_63, %c0_64, %c0_65], %84 {strides = array<i32>} : memref<9x8x256xf32, #tpu.memory_space<vmem>>, vector<1x8x256xf32>,
    %c0_66 = arith.constant 0 : index
    %c0_67 = arith.constant 0 : index
    %c0_68 = arith.constant 0 : index
    %85 = vector.load %arg10[%c0_66, %c0_67, %c0_68] : memref<9x8x256xf32, #tpu.memory_space<vmem>>, vector<9x8x256xf32>
    %86 = vector.shape_cast %85 : vector<9x8x256xf32> to vector<72x256xf32>
    %87 = arith.truncf %86 : vector<72x256xf32> to vector<72x256xbf16>
    %c0_69 = arith.constant 0 : index
    %c0_70 = arith.constant 0 : index
    %88 = vector.load %arg3[%c0_69, %c0_70] : memref<8x72xbf16, #tpu.memory_space<vmem>>, vector<8x72xbf16>
    %cst_71 = arith.constant dense<0.000000e+00> : vector<8x256xf32>
    %89 = tpu.matmul %88, %87, %cst_71 {dimension_numbers = #tpu.dot_dimension_numbers<[1], [0], [0], [1], [0, 0, 1, 1], [], []>} : vector<8x72xbf16>, vector<72x256xbf16>, vector<8x256xf32> -> vector<8x256xf32>
    %c0_72 = arith.constant 0 : index
    %c0_73 = arith.constant 0 : index
    %c0_74 = arith.constant 0 : index
    %90 = vector.load %arg6[%c0_72, %c0_73, %c0_74] : memref<1x8x256xf32, #tpu.memory_space<vmem>>, vector<1x8x256xf32>
    %91 = vector.shape_cast %90 : vector<1x8x256xf32> to vector<8x256xf32>
    %92 = vector.shape_cast %89 : vector<8x256xf32> to vector<1x8x256xf32>
    tpu.vector_store %arg6[%c0_72, %c0_73, %c0_74], %92 {strides = array<i32>} : memref<1x8x256xf32, #tpu.memory_space<vmem>>, vector<1x8x256xf32>,
    %cst_75 = arith.constant dense<0.000000e+00> : vector<8xf32>
    %93 = vector.multi_reduction <add>, %89, %cst_75 [1] : vector<8x256xf32> to vector<8xf32>
    %94 = vector.shape_cast %93 : vector<8xf32> to vector<8x1xf32>
    %c0_76 = arith.constant 0 : index
    %c0_77 = arith.constant 0 : index
    %c0_78 = arith.constant 0 : index
    %95 = vector.load %arg7[%c0_76, %c0_77, %c0_78] : memref<1x8x1xf32, #tpu.memory_space<vmem>>, vector<1x8x1xf32>
    %96 = vector.shape_cast %95 : vector<1x8x1xf32> to vector<8x1xf32>
    %97 = vector.shape_cast %94 : vector<8x1xf32> to vector<1x8x1xf32>
    tpu.vector_store %arg7[%c0_76, %c0_77, %c0_78], %97 {strides = array<i32>} : memref<1x8x1xf32, #tpu.memory_space<vmem>>, vector<1x8x1xf32>,
    %98 = arith.mulf %89, %89 : vector<8x256xf32>
    %cst_79 = arith.constant dense<0.000000e+00> : vector<8xf32>
    %99 = vector.multi_reduction <add>, %98, %cst_79 [1] : vector<8x256xf32> to vector<8xf32>
    %100 = vector.shape_cast %99 : vector<8xf32> to vector<8x1xf32>
    %c0_80 = arith.constant 0 : index
    %c0_81 = arith.constant 0 : index
    %c0_82 = arith.constant 0 : index
    %101 = vector.load %arg8[%c0_80, %c0_81, %c0_82] : memref<1x8x1xf32, #tpu.memory_space<vmem>>, vector<1x8x1xf32>
    %102 = vector.shape_cast %101 : vector<1x8x1xf32> to vector<8x1xf32>
    %103 = vector.shape_cast %100 : vector<8x1xf32> to vector<1x8x1xf32>
    tpu.vector_store %arg8[%c0_80, %c0_81, %c0_82], %103 {strides = array<i32>} : memref<1x8x1xf32, #tpu.memory_space<vmem>>, vector<1x8x1xf32>,
    return
  }
  func.func @transform_0(%arg0: i32) -> (i32, i32, i32) {
    %c0_i32 = arith.constant 0 : i32
    %c0_i32_0 = arith.constant 0 : i32
    %c0_i32_1 = arith.constant 0 : i32
    %c0_i32_2 = arith.constant 0 : i32
    return %c0_i32, %c0_i32_0, %c0_i32_1 : i32, i32, i32
  }
  func.func @transform_1(%arg0: i32) -> (i32, i32, i32) {
    %c0_i32 = arith.constant 0 : i32
    %c0_i32_0 = arith.constant 0 : i32
    %c0_i32_1 = arith.constant 0 : i32
    return %arg0, %c0_i32, %c0_i32_0 : i32, i32, i32
  }
  func.func @transform_2(%arg0: i32) -> (i32, i32) {
    %c0_i32 = arith.constant 0 : i32
    %c0_i32_0 = arith.constant 0 : i32
    %c0_i32_1 = arith.constant 0 : i32
    return %c0_i32, %c0_i32_0 : i32, i32
  }
  func.func @transform_3(%arg0: i32) -> (i32, i32) {
    %c0_i32 = arith.constant 0 : i32
    %c0_i32_0 = arith.constant 0 : i32
    %c0_i32_1 = arith.constant 0 : i32
    return %c0_i32, %c0_i32_0 : i32, i32
  }
  func.func @transform_4(%arg0: i32) -> (i32, i32) {
    %c0_i32 = arith.constant 0 : i32
    %c0_i32_0 = arith.constant 0 : i32
    %c0_i32_1 = arith.constant 0 : i32
    return %c0_i32, %c0_i32_0 : i32, i32
  }
  func.func @transform_5(%arg0: i32) -> (i32, i32, i32) {
    %c0_i32 = arith.constant 0 : i32
    %c0_i32_0 = arith.constant 0 : i32
    %c0_i32_1 = arith.constant 0 : i32
    return %arg0, %c0_i32, %c0_i32_0 : i32, i32, i32
  }
  func.func @transform_6(%arg0: i32) -> (i32, i32, i32) {
    %c0_i32 = arith.constant 0 : i32
    %c0_i32_0 = arith.constant 0 : i32
    %c0_i32_1 = arith.constant 0 : i32
    return %arg0, %c0_i32, %c0_i32_0 : i32, i32, i32
  }
  func.func @transform_7(%arg0: i32) -> (i32, i32, i32) {
    %c0_i32 = arith.constant 0 : i32
    %c0_i32_0 = arith.constant 0 : i32
    %c0_i32_1 = arith.constant 0 : i32
    return %arg0, %c0_i32, %c0_i32_0 : i32, i32, i32
  }
}

</mosaic_0001>

<llo_original>
// kernel: tile.18
$region0: #{tile.18}
  #allocation0 [shape = 's32[1]{0}', space=sflag, size = 0x4, scoped, tag = 'scoped memory for tile.18']
  %s0 = inlined_call_operand.vmem [shape: f32[8], index: 0, kind: input, shape index: {}]
  %s1 = inlined_call_operand.vmem [shape: f32[2,8], index: 1, kind: output, shape index: {}]
  // Predicated region
  $region2: #{tile.18} parent=0 // pred_check
    _
  $region3: #{tile.18} parent=0 // pred_check_branch
    %3 = sbr.rel (0) target = $region5
  $region4: #{tile.18} parent=0 // pred_region
    _
  $region5: #{tile.18} parent=0 // pred_fallthru
    _
  %v4 = vld [vmem:[%s0] ss:$0 sm:$0xff]
  %5 = vst [vmem:[%s1] sm:$0x3] %v4

// kernel: tile.0
$region0: #{tile.0}
  %s0 = inlined_call_operand.vmem [shape: f32[2,8], index: 0, kind: input, shape index: {}]
  %s1 = inlined_call_operand.vmem [shape: f32[16,1], index: 1, kind: output, shape index: {}]
  $region1: #{tile.0} parent=0
    #allocation0 [shape = 'u8[4096]{0}', space=vmem, size = 0x1000, scoped, tag = 'scoped mem for input reshape']
    %s3 = ssub.s32 4, 1
    %v4 = vld [vmem:[%s0] sm:%s3]
    %5 = vst [vmem:[#allocation0] sm:%s3] %v4
    %v6 = vld [vmem:[#allocation0] sm:$0x3]
    %vm7 = vcmask 7168
    %8 = vst.msk [vmem:[%s1] ss:$8 sm:$0x3] %vm7, %v6
    %v9 = vld [vmem:[#allocation0] sm:$0x3]
    %10 = vrot.lane.b32.xlu0 %v9, 127
    %v11 = vpop.permute.xlu0 %10
    %vm12 = vcmask 7168
    %s13 = scalar_lea.vmem %s1, 1
    %14 = vst.msk [vmem:[%s13] ss:$8 sm:$0x3] %vm12, %v11
    %v15 = vld [vmem:[#allocation0] sm:$0x3]
    %16 = vrot.lane.b32.xlu0 %v15, 126
    %v17 = vpop.permute.xlu0 %16
    %vm18 = vcmask 7168
    %s19 = scalar_lea.vmem %s1, 2
    %20 = vst.msk [vmem:[%s19] ss:$8 sm:$0x3] %vm18, %v17
    %v21 = vld [vmem:[#allocation0] sm:$0x3]
    %22 = vrot.lane.b32.xlu0 %v21, 125
    %v23 = vpop.permute.xlu0 %22
    %vm24 = vcmask 7168
    %s25 = scalar_lea.vmem %s1, 3
    %26 = vst.msk [vmem:[%s25] ss:$8 sm:$0x3] %vm24, %v23
    %v27 = vld [vmem:[#allocation0] sm:$0x3]
    %28 = vrot.lane.b32.xlu0 %v27, 124
    %v29 = vpop.permute.xlu0 %28
    %vm30 = vcmask 7168
    %s31 = scalar_lea.vmem %s1, 4
    %32 = vst.msk [vmem:[%s31] ss:$8 sm:$0x3] %vm30, %v29
    %v33 = vld [vmem:[#allocation0] sm:$0x3]
    %34 = vrot.lane.b32.xlu0 %v33, 123
    %v35 = vpop.permute.xlu0 %34
    %vm36 = vcmask 7168
    %s37 = scalar_lea.vmem %s1, 5
    %38 = vst.msk [vmem:[%s37] ss:$8 sm:$0x3] %vm36, %v35
    %v39 = vld [vmem:[#allocation0] sm:$0x3]
    %40 = vrot.lane.b32.xlu0 %v39, 122
    %v41 = vpop.permute.xlu0 %40
    %vm42 = vcmask 7168
    %s43 = scalar_lea.vmem %s1, 6
    %44 = vst.msk [vmem:[%s43] ss:$8 sm:$0x3] %vm42, %v41
    %v45 = vld [vmem:[#allocation0] sm:$0x3]
    %46 = vrot.lane.b32.xlu0 %v45, 121
    %v47 = vpop.permute.xlu0 %46
    %vm48 = vcmask 7168
    %s49 = scalar_lea.vmem %s1, 7
    %50 = vst.msk [vmem:[%s49] ss:$8 sm:$0x3] %vm48, %v47

// kernel: double_conv.5
$region0: #{double_conv.5}
  #allocation0 [shape = 'u32[]', space=smem, size = 0x4, offset = 0x4, fixed_abs, tag = 'smem constant byte address 0x4 - core index']
  #allocation1 [shape = 'u32[72,128]{1,0:T(1,128)}', space=vmem, size = 0x9000, scoped, tag = 'internal scratch']
  %s0 = inlined_call_operand.vmem [shape: f32[16,256], index: 0, kind: input, shape index: {}]
  %s1 = inlined_call_operand.vmem [shape: f32[16,1], index: 1, kind: input, shape index: {}]
  %s2 = inlined_call_operand.vmem [shape: f32[16,1], index: 2, kind: input, shape index: {}]
  %s3 = inlined_call_operand.vmem [shape: f32[16,256], index: 3, kind: output, shape index: {}]
  %s4 = sld [smem:[#allocation0]]
  $region22: #{double_conv.5} parent=0
    _
  %s6 = ssub.s32 1, %s4
  %s7 = scalar_select 0, %s6, %s4
  // Predicated region
  $region2: #{double_conv.5} parent=0 // pred_check
    _
  $region3: #{double_conv.5} parent=0 // pred_check_branch
    %9 = sbr.rel (0) target = $region5
  $region4: #{double_conv.5} parent=0 // pred_region
    _
  $region5: #{double_conv.5} parent=0 // pred_fallthru
    _
  // Predicated region
  $region6: #{double_conv.5} parent=0 // pred_check
    _
  $region7: #{double_conv.5} parent=0 // pred_check_branch
    %11 = sbr.rel (0) target = $region9
  $region8: #{double_conv.5} parent=0 // pred_region
    _
  $region9: #{double_conv.5} parent=0 // pred_fallthru
    _
  // Predicated region
  $region10: #{double_conv.5} parent=0 // pred_check
    _
  $region11: #{double_conv.5} parent=0 // pred_check_branch
    %13 = sbr.rel (0) target = $region13
  $region12: #{double_conv.5} parent=0 // pred_region
    _
  $region13: #{double_conv.5} parent=0 // pred_fallthru
    _
  %v14 = vld [vmem:[%s0] sm:$0xff]
  %v15 = vld [vmem:[%s0 + $0x8] sm:$0xff]
  %v16 = vld [vmem:[%s0 + $0x10] sm:$0xff]
  %v17 = vld [vmem:[%s0 + $0x18] sm:$0xff]
  %v18 = vld [vmem:[%s1] sm:$0xff]
  %v19 = vld [vmem:[%s1 + $0x8] sm:$0xff]
  %21 = vset.pattern.permute.xlu0 0
  %22 = vperm.xlu0 %21, %v18
  %v23 = vpop.permute.xlu0 %22
  %26 = vset.pattern.permute.xlu0 0
  %27 = vperm.xlu0 %26, %v19
  %v28 = vpop.permute.xlu0 %27
  %v30 = vmul.f32 %v14, %v23
  %v31 = vmul.f32 %v15, %v23
  %v32 = vmul.f32 %v16, %v28
  %v33 = vmul.f32 %v17, %v28
  %v34 = vld [vmem:[%s2] sm:$0xff]
  %v35 = vld [vmem:[%s2 + $0x8] sm:$0xff]
  %37 = vset.pattern.permute.xlu0 0
  %38 = vperm.xlu0 %37, %v34
  %v39 = vpop.permute.xlu0 %38
  %42 = vset.pattern.permute.xlu0 0
  %43 = vperm.xlu0 %42, %v35
  %v44 = vpop.permute.xlu0 %43
  %v46 = vadd.f32 %v30, %v39
  %v47 = vadd.f32 %v31, %v39
  %v48 = vadd.f32 %v32, %v44
  %v49 = vadd.f32 %v33, %v44
  %v50 = vmax.f32 %v46, 0.0
  %v51 = vmax.f32 %v47, 0.0
  %v52 = vmax.f32 %v48, 0.0
  %v53 = vmax.f32 %v49, 0.0
  %54 = vst [vmem:[%s3] sm:$0xff] %v50
  %55 = vst [vmem:[%s3 + $0x8] sm:$0xff] %v51
  %56 = vst [vmem:[%s3 + $0x10] sm:$0xff] %v52
  %57 = vst [vmem:[%s3 + $0x18] sm:$0xff] %v53
  // Predicated region
  $region14: #{double_conv.5} parent=0 // pred_check
    _
  $region15: #{double_conv.5} parent=0 // pred_check_branch
    %59 = sbr.rel (0) target = $region17
  $region16: #{double_conv.5} parent=0 // pred_region
    _
  $region17: #{double_conv.5} parent=0 // pred_fallthru
    _
  // Predicated region
  $region18: #{double_conv.5} parent=0 // pred_check
    _
  $region19: #{double_conv.5} parent=0 // pred_check_branch
    %61 = sbr.rel (0) target = $region21
  $region20: #{double_conv.5} parent=0 // pred_region
    _
  $region21: #{double_conv.5} parent=0 // pred_fallthru
    _

// kernel: double_conv.3
$region0: #{double_conv.3}
  #allocation0 [shape = 'u32[]', space=smem, size = 0x4, offset = 0x4, fixed_abs, tag = 'smem constant byte address 0x4 - core index']
  #allocation1 [shape = 'u32[72,128]{1,0:T(1,128)}', space=vmem, size = 0x9000, scoped, tag = 'internal scratch']
  #allocation2 [shape = 'f32[4,512]{1,0:T(4,128)}', space=vmem, size = 0x2000, scoped, tag = 'scratch operand']
  #allocation3 [shape = 'f32[9,4,256]{2,1,0:T(4,128)}', space=vmem, size = 0x9000, scoped, tag = 'scratch operand']
  %s0 = inlined_call_operand.vmem [shape: f32[9,1,256], index: 0, kind: input, shape index: {}]
  %s1 = inlined_call_operand.vmem [shape: f32[2,4,256], index: 1, kind: input, shape index: {}]
  %s2 = inlined_call_operand.vmem [shape: bf16[8,36], index: 2, kind: input, shape index: {}]
  %s3 = inlined_call_operand.vmem [shape: f32[4,1], index: 3, kind: input, shape index: {}]
  %s4 = inlined_call_operand.vmem [shape: f32[4,1], index: 4, kind: input, shape index: {}]
  %s5 = inlined_call_operand.vmem [shape: f32[2,8,256], index: 5, kind: output, shape index: {0}]
  %s6 = inlined_call_operand.vmem [shape: f32[2,8,1], index: 6, kind: output, shape index: {1}]
  %s7 = inlined_call_operand.vmem [shape: f32[2,8,1], index: 7, kind: output, shape index: {2}]
  %8 = xla_tuple %s5, %s6, %s7
  %s9 = sld [smem:[#allocation0]]
  $region69: #{double_conv.3} parent=0
    _
  %s11 = ssub.s32 1, %s9
  %s12 = scalar_select 0, %s11, %s9
  loop: start=0, step=1, limit=4
  $region2: #{double_conv.3} parent=0 // loop_pre_header
    _
  $region3: #{double_conv.3} parent=0 // loop_header
    %s14 = sphi 0, %s18
    %p15 = scmp.ge.s32.totalorder %s14, 4
    %s22 = sphi 0, %s22
    %s24 = sphi 0, %s22
    %s25 = sphi 0, %s24
    %s39 = sphi 0, %s25
    %s45 = sphi 0, %s47
    %s48 = sphi 0, %s45
    %s49 = sphi 0, %s48
    %s65 = sphi 0, %s49
    %s69 = sphi 0, %s69
    %s71 = sphi 0, %s69
    %s72 = sphi 0, %s71
    %s86 = sphi 0, %s72
    %s90 = sphi 0, %s90
    %s92 = sphi 0, %s90
    %s93 = sphi 0, %s92
    %s107 = sphi 0, %s93
    %s111 = sphi 0, %s111
    %s113 = sphi 0, %s111
    %s114 = sphi 0, %s113
    %s128 = sphi 0, %s114
    %s134 = sphi 0, %s136
    %s137 = sphi 0, %s134
    %s138 = sphi 0, %s137
    %s154 = sphi 0, %s138
    %s160 = sphi 0, %s162
    %s163 = sphi 0, %s160
    %s164 = sphi 0, %s163
    %s180 = sphi 0, %s164
    %s186 = sphi 0, %s188
    %s189 = sphi 0, %s186
    %s190 = sphi 0, %s189
    %s206 = sphi 0, %s190
  $region4: #{double_conv.3} parent=0 // loop_header_branch
    %17 = sbr.rel (%p15) target = $region8
  $region5: #{double_conv.3} parent=0 // loop_body
    %s19 = ssub.s32 %s14, 1
    %s20 = ssub.s32 %s14, 2
    %s21 = sadd.s32 %s14, 1
    %s23 = sadd.s32 %s22, 1
    %p26 = scmp.eq.s32.totalorder %s14, 1
    %p27 = scmp.ne.s32.totalorder %s22, %s24
    %p28 = scmp.eq.s32.totalorder %s14, 0
    %p29 = por %p27, %p28
    %p30 = scmp.ne.s32.totalorder %s22, %s24
    %p31 = scmp.eq.s32.totalorder %s19, 1
    %p32 = por %p30, %p31
    %p33 = scmp.ne.s32.totalorder %s24, %s25
    %p34 = scmp.eq.s32.totalorder %s19, 0
    %p35 = por %p33, %p34
    %p36 = scmp.ne.s32.totalorder %s24, %s25
    %p37 = scmp.eq.s32.totalorder %s20, 1
    %p38 = por %p36, %p37
    %p40 = scmp.ne.s32.totalorder %s25, %s39
    %p41 = scmp.eq.s32.totalorder %s20, 0
    %p42 = por %p40, %p41
    %s43 = ssub.s32 %s14, %s21
    %p44 = scmp.eq.s32.totalorder %s43, 0
    %s46 = sadd.s32 %s45, 1
    %s47 = scalar_select %p44, %s45, %s46
    %p50 = pneg %p44
    %p51 = scmp.eq.s32.totalorder %s14, 1
    %p52 = por %p50, %p51
    %p53 = scmp.ne.s32.totalorder %s45, %s48
    %p54 = scmp.eq.s32.totalorder %s14, 0
    %p55 = por %p53, %p54
    %p56 = scmp.ne.s32.totalorder %s45, %s48
    %p57 = scmp.eq.s32.totalorder %s19, 1
    %p58 = por %p56, %p57
    %p59 = scmp.ne.s32.totalorder %s48, %s49
    %p60 = scmp.eq.s32.totalorder %s19, 0
    %p61 = por %p59, %p60
    %p62 = scmp.ne.s32.totalorder %s48, %s49
    %p63 = scmp.eq.s32.totalorder %s20, 1
    %p64 = por %p62, %p63
    %p66 = scmp.ne.s32.totalorder %s49, %s65
    %p67 = scmp.eq.s32.totalorder %s20, 0
    %p68 = por %p66, %p67
    %s70 = sadd.s32 %s69, 1
    %p73 = scmp.eq.s32.totalorder %s14, 1
    %p74 = scmp.ne.s32.totalorder %s69, %s71
    %p75 = scmp.eq.s32.totalorder %s14, 0
    %p76 = por %p74, %p75
    %p77 = scmp.ne.s32.totalorder %s69, %s71
    %p78 = scmp.eq.s32.totalorder %s19, 1
    %p79 = por %p77, %p78
    %p80 = scmp.ne.s32.totalorder %s71, %s72
    %p81 = scmp.eq.s32.totalorder %s19, 0
    %p82 = por %p80, %p81
    %p83 = scmp.ne.s32.totalorder %s71, %s72
    %p84 = scmp.eq.s32.totalorder %s20, 1
    %p85 = por %p83, %p84
    %p87 = scmp.ne.s32.totalorder %s72, %s86
    %p88 = scmp.eq.s32.totalorder %s20, 0
    %p89 = por %p87, %p88
    %s91 = sadd.s32 %s90, 1
    %p94 = scmp.eq.s32.totalorder %s14, 1
    %p95 = scmp.ne.s32.totalorder %s90, %s92
    %p96 = scmp.eq.s32.totalorder %s14, 0
    %p97 = por %p95, %p96
    %p98 = scmp.ne.s32.totalorder %s90, %s92
    %p99 = scmp.eq.s32.totalorder %s19, 1
    %p100 = por %p98, %p99
    %p101 = scmp.ne.s32.totalorder %s92, %s93
    %p102 = scmp.eq.s32.totalorder %s19, 0
    %p103 = por %p101, %p102
    %p104 = scmp.ne.s32.totalorder %s92, %s93
    %p105 = scmp.eq.s32.totalorder %s20, 1
    %p106 = por %p104, %p105
    %p108 = scmp.ne.s32.totalorder %s93, %s107
    %p109 = scmp.eq.s32.totalorder %s20, 0
    %p110 = por %p108, %p109
    %s112 = sadd.s32 %s111, 1
    %p115 = scmp.eq.s32.totalorder %s14, 1
    %p116 = scmp.ne.s32.totalorder %s111, %s113
    %p117 = scmp.eq.s32.totalorder %s14, 0
    %p118 = por %p116, %p117
    %p119 = scmp.ne.s32.totalorder %s111, %s113
    %p120 = scmp.eq.s32.totalorder %s19, 1
    %p121 = por %p119, %p120
    %p122 = scmp.ne.s32.totalorder %s113, %s114
    %p123 = scmp.eq.s32.totalorder %s19, 0
    %p124 = por %p122, %p123
    %p125 = scmp.ne.s32.totalorder %s113, %s114
    %p126 = scmp.eq.s32.totalorder %s20, 1
    %p127 = por %p125, %p126
    %p129 = scmp.ne.s32.totalorder %s114, %s128
    %p130 = scmp.eq.s32.totalorder %s20, 0
    %p131 = por %p129, %p130
    %s132 = ssub.s32 %s14, %s21
    %p133 = scmp.eq.s32.totalorder %s132, 0
    %s135 = sadd.s32 %s134, 1
    %s136 = scalar_select %p133, %s134, %s135
    %p139 = pneg %p133
    %p140 = scmp.eq.s32.totalorder %s14, 1
    %p141 = por %p139, %p140
    %p142 = scmp.ne.s32.totalorder %s134, %s137
    %p143 = scmp.eq.s32.totalorder %s14, 0
    %p144 = por %p142, %p143
    %p145 = scmp.ne.s32.totalorder %s134, %s137
    %p146 = scmp.eq.s32.totalorder %s19, 1
    %p147 = por %p145, %p146
    %p148 = scmp.ne.s32.totalorder %s137, %s138
    %p149 = scmp.eq.s32.totalorder %s19, 0
    %p150 = por %p148, %p149
    %p151 = scmp.ne.s32.totalorder %s137, %s138
    %p152 = scmp.eq.s32.totalorder %s20, 1
    %p153 = por %p151, %p152
    %p155 = scmp.ne.s32.totalorder %s138, %s154
    %p156 = scmp.eq.s32.totalorder %s20, 0
    %p157 = por %p155, %p156
    %s158 = ssub.s32 %s14, %s21
    %p159 = scmp.eq.s32.totalorder %s158, 0
    %s161 = sadd.s32 %s160, 1
    %s162 = scalar_select %p159, %s160, %s161
    %p165 = pneg %p159
    %p166 = scmp.eq.s32.totalorder %s14, 1
    %p167 = por %p165, %p166
    %p168 = scmp.ne.s32.totalorder %s160, %s163
    %p169 = scmp.eq.s32.totalorder %s14, 0
    %p170 = por %p168, %p169
    %p171 = scmp.ne.s32.totalorder %s160, %s163
    %p172 = scmp.eq.s32.totalorder %s19, 1
    %p173 = por %p171, %p172
    %p174 = scmp.ne.s32.totalorder %s163, %s164
    %p175 = scmp.eq.s32.totalorder %s19, 0
    %p176 = por %p174, %p175
    %p177 = scmp.ne.s32.totalorder %s163, %s164
    %p178 = scmp.eq.s32.totalorder %s20, 1
    %p179 = por %p177, %p178
    %p181 = scmp.ne.s32.totalorder %s164, %s180
    %p182 = scmp.eq.s32.totalorder %s20, 0
    %p183 = por %p181, %p182
    %s184 = ssub.s32 %s14, %s21
    %p185 = scmp.eq.s32.totalorder %s184, 0
    %s187 = sadd.s32 %s186, 1
    %s188 = scalar_select %p185, %s186, %s187
    %p191 = pneg %p185
    %p192 = scmp.eq.s32.totalorder %s14, 1
    %p193 = por %p191, %p192
    %p194 = scmp.ne.s32.totalorder %s186, %s189
    %p195 = scmp.eq.s32.totalorder %s14, 0
    %p196 = por %p194, %p195
    %p197 = scmp.ne.s32.totalorder %s186, %s189
    %p198 = scmp.eq.s32.totalorder %s19, 1
    %p199 = por %p197, %p198
    %p200 = scmp.ne.s32.totalorder %s189, %s190
    %p201 = scmp.eq.s32.totalorder %s19, 0
    %p202 = por %p200, %p201
    %p203 = scmp.ne.s32.totalorder %s189, %s190
    %p204 = scmp.eq.s32.totalorder %s20, 1
    %p205 = por %p203, %p204
    %p207 = scmp.ne.s32.totalorder %s190, %s206
    %p208 = scmp.eq.s32.totalorder %s20, 0
    %p209 = por %p207, %p208
    %p210 = scmp.le.s32.totalorder 1, %s14
    %p211 = scmp.lt.s32.totalorder %s14, 3
    %p212 = pnand %p210, %p211
    %p213 = pneg %p212
    // Predicated region
    $region9: #{double_conv.3} parent=5 // pred_check
      _
    $region10: #{double_conv.3} parent=5 // pred_check_branch
      %215 = sbr.rel (%p212) target = $region12
    $region11: #{double_conv.3} parent=5 // pred_region
      %s216 = ssub.s32 %s14, 1
      // Predicated region
      $region13: #{double_conv.3} parent=11 // pred_check
        %p217 = pneg %p35
      $region14: #{double_conv.3} parent=11 // pred_check_branch
        %219 = sbr.rel (%p217) target = $region16
      $region15: #{double_conv.3} parent=11 // pred_region
        _
      $region16: #{double_conv.3} parent=11 // pred_fallthru
        _
      // Predicated region
      $region17: #{double_conv.3} parent=11 // pred_check
        %p220 = pneg %p82
      $region18: #{double_conv.3} parent=11 // pred_check_branch
        %222 = sbr.rel (%p220) target = $region20
      $region19: #{double_conv.3} parent=11 // pred_region
        _
      $region20: #{double_conv.3} parent=11 // pred_fallthru
        _
      // Predicated region
      $region21: #{double_conv.3} parent=11 // pred_check
        %p223 = pneg %p103
      $region22: #{double_conv.3} parent=11 // pred_check_branch
        %225 = sbr.rel (%p223) target = $region24
      $region23: #{double_conv.3} parent=11 // pred_region
        _
      $region24: #{double_conv.3} parent=11 // pred_fallthru
        _
      // Predicated region
      $region25: #{double_conv.3} parent=11 // pred_check
        %p226 = pneg %p124
      $region26: #{double_conv.3} parent=11 // pred_check_branch
        %228 = sbr.rel (%p226) target = $region28
      $region27: #{double_conv.3} parent=11 // pred_region
        _
      $region28: #{double_conv.3} parent=11 // pred_fallthru
        _
    $region12: #{double_conv.3} parent=5 // pred_fallthru
      _
    %p229 = scmp.lt.s32.totalorder %s14, 2
    // Predicated region
    $region29: #{double_conv.3} parent=5 // pred_check
      %p230 = pneg %p229
    $region30: #{double_conv.3} parent=5 // pred_check_branch
      %232 = sbr.rel (%p230) target = $region32
    $region31: #{double_conv.3} parent=5 // pred_region
      // Predicated region
      $region33: #{double_conv.3} parent=31 // pred_check
        %p233 = pneg %p55
      $region34: #{double_conv.3} parent=31 // pred_check_branch
        %235 = sbr.rel (%p233) target = $region36
      $region35: #{double_conv.3} parent=31 // pred_region
        %p236 = scmp.lt.s32.totalorder %s14, 1
        %s237 = scalar_select %p236, %s14, 1
        %s238 = smul.addr %s237, 2
        %s239 = smul.addr %s238, 4
        %s240 = scalar_lea.vmem %s1, %s239
      $region36: #{double_conv.3} parent=31 // pred_fallthru
        _
    $region32: #{double_conv.3} parent=5 // pred_fallthru
      _
    %p241 = scmp.le.s32.totalorder 1, %s14
    %p242 = scmp.lt.s32.totalorder %s14, 3
    %p243 = pnand %p241, %p242
    %p244 = pneg %p243
    // Predicated region
    $region37: #{double_conv.3} parent=5 // pred_check
      _
    $region38: #{double_conv.3} parent=5 // pred_check_branch
      %246 = sbr.rel (%p243) target = $region40
    $region39: #{double_conv.3} parent=5 // pred_region
      %s247 = ssub.s32 %s14, 1
      %p248 = pneg %p35
      %p249 = pneg %p32
      %p250 = scmp.lt.s32.totalorder %s19, 1
      %s251 = scalar_select %p250, %s19, 1
      %s252 = smul.addr %s251, 2
      %s253 = smul.addr %s252, 4
      %s254 = scalar_lea.vmem %s1, %s253
      %p255 = pneg %p61
      %p256 = pneg %p58
      %p257 = pneg %p82
      %p258 = pneg %p79
      %p259 = pneg %p103
      %p260 = pneg %p100
      %p261 = pneg %p124
      %p262 = pneg %p121
      %p263 = pneg %p150
      %p264 = pneg %p147
      %p265 = scmp.lt.s32.totalorder %s19, 1
      %s266 = scalar_select %p265, %s19, 1
      %s267 = smul.addr %s266, 2
      %s268 = smul.addr %s267, 8
      %s269 = scalar_lea.vmem %s5, %s268
      %p270 = pneg %p176
      %p271 = pneg %p173
      %p272 = scmp.lt.s32.totalorder %s19, 1
      %s273 = scalar_select %p272, %s19, 1
      %s274 = smul.addr %s273, 8
      %s275 = scalar_lea.vmem %s6, %s274
      %p276 = pneg %p202
      %p277 = pneg %p199
      %p278 = scmp.lt.s32.totalorder %s19, 1
      %s279 = scalar_select %p278, %s19, 1
      %s280 = smul.addr %s279, 8
      %s281 = scalar_lea.vmem %s7, %s280
      %p282 = scmp.lt.s32.totalorder %s19, 1
      %s283 = scalar_select %p282, %s19, 1
      %s284 = smul.addr %s283, 2
      %s285 = smul.addr %s284, 4
      %s286 = scalar_lea.vmem %s1, %s285
      %p287 = scmp.lt.s32.totalorder %s19, 1
      %s288 = scalar_select %p287, %s19, 1
      %s289 = smul.addr %s288, 2
      %s290 = smul.addr %s289, 8
      %s291 = scalar_lea.vmem %s5, %s290
      %p292 = scmp.lt.s32.totalorder %s19, 1
      %s293 = scalar_select %p292, %s19, 1
      %s294 = smul.addr %s293, 8
      %s295 = scalar_lea.vmem %s6, %s294
      %p296 = scmp.lt.s32.totalorder %s19, 1
      %s297 = scalar_select %p296, %s19, 1
      %s298 = smul.addr %s297, 8
      %s299 = scalar_lea.vmem %s7, %s298
      %v301 = vld [vmem:[%s286] sm:$0xff]
      %302 = vst [vmem:[#allocation2] sm:$0xff] 0.0
      %303 = vst [vmem:[#allocation2 + $0x8] sm:$0xff] 0.0
      %304 = vst [vmem:[#allocation2 + $0x4] sm:$0xff] %v301
      %v305 = vld [vmem:[#allocation2] sm:$0xff]
      %v306 = vld [vmem:[#allocation2 + $0x8] sm:$0xf]
      %v307 = vld [vmem:[%s0] sm:$0x3]
      %v309 = vperm.slane %v307, 0
      %v310 = vperm.slane %v307, 1
      %v311 = vrot.slane %v310, 4
      %vm312 = vcmask 1043456
      %v313 = vsel %vm312, %v309, %v311
      %314 = vrot.lane.b32.xlu0 %v313, 111
      %v315 = vpop.permute.xlu0 %314
      %v316 = vrot.slane %v315, 4
      %vm317 = vcmask 908288
      %v318 = vsel %vm317, %v316, %v315
      %v321 = vmul.f32 %v305, %v318
      %v322 = vmul.f32 %v306, %v316
      %325 = vrot.lane.b32.xlu0 %v321, 17
      %v326 = vpop.permute.xlu0 %325
      %327 = vrot.lane.b32.xlu0 %v322, 17
      %v328 = vpop.permute.xlu0 %327
      %v329 = vrot.slane %v326, 4
      %v330 = vrot.slane %v328, 4
      %v331 = vsel %vm312, %v329, %v330
      %vm332 = vcmask 138240
      %v333 = vsel %vm332, %v326, %v331
      %335 = vst [vmem:[#allocation3] sm:$0xff] %v333
      %v336 = vld [vmem:[#allocation2] sm:$0xff]
      %v337 = vld [vmem:[#allocation2 + $0x8] sm:$0xf]
      %s338 = scalar_lea.vmem %s0, 2
      %v339 = vld [vmem:[%s338] sm:$0x3]
      %v341 = vperm.slane %v339, 0
      %v342 = vperm.slane %v339, 1
      %v343 = vrot.slane %v342, 4
      %v344 = vsel %vm312, %v341, %v343
      %345 = vrot.lane.b32.xlu0 %v344, 112
      %v346 = vpop.permute.xlu0 %345
      %v347 = vrot.slane %v346, 4
      %vm348 = vcmask 916480
      %v349 = vsel %vm348, %v347, %v346
      %v352 = vmul.f32 %v336, %v349
      %v353 = vmul.f32 %v337, %v347
      %356 = vrot.lane.b32.xlu0 %v352, 16
      %v357 = vpop.permute.xlu0 %356
      %358 = vrot.lane.b32.xlu0 %v353, 16
      %v359 = vpop.permute.xlu0 %358
      %v360 = vrot.slane %v357, 4
      %v361 = vrot.slane %v359, 4
      %v362 = vsel %vm312, %v360, %v361
      %vm363 = vcmask 130048
      %v364 = vsel %vm363, %v357, %v362
      %s366 = scalar_lea.vmem [#allocation3], 8
      %367 = vst [vmem:[%s366] sm:$0xff] %v364
      %v368 = vld [vmem:[#allocation2] sm:$0xff]
      %v369 = vld [vmem:[#allocation2 + $0x8] sm:$0xf]
      %s370 = scalar_lea.vmem %s0, 4
      %v371 = vld [vmem:[%s370] sm:$0x3]
      %v373 = vperm.slane %v371, 0
      %v374 = vperm.slane %v371, 1
      %v375 = vrot.slane %v374, 4
      %v376 = vsel %vm312, %v373, %v375
      %377 = vrot.lane.b32.xlu0 %v376, 113
      %v378 = vpop.permute.xlu0 %377
      %v379 = vrot.slane %v378, 4
      %vm380 = vcmask 924672
      %v381 = vsel %vm380, %v379, %v378
      %v384 = vmul.f32 %v368, %v381
      %v385 = vmul.f32 %v369, %v379
      %388 = vrot.lane.b32.xlu0 %v384, 15
      %v389 = vpop.permute.xlu0 %388
      %390 = vrot.lane.b32.xlu0 %v385, 15
      %v391 = vpop.permute.xlu0 %390
      %v392 = vrot.slane %v389, 4
      %v393 = vrot.slane %v391, 4
      %v394 = vsel %vm312, %v392, %v393
      %vm395 = vcmask 121856
      %v396 = vsel %vm395, %v389, %v394
      %s398 = scalar_lea.vmem [#allocation3], 16
      %399 = vst [vmem:[%s398] sm:$0xff] %v396
      %v400 = vld [vmem:[#allocation2] sm:$0xff]
      %v401 = vld [vmem:[#allocation2 + $0x8] sm:$0xf]
      %s402 = scalar_lea.vmem %s0, 6
      %v403 = vld [vmem:[%s402] sm:$0x3]
      %v405 = vperm.slane %v403, 0
      %v406 = vperm.slane %v403, 1
      %v407 = vrot.slane %v406, 4
      %v408 = vsel %vm312, %v405, %v407
      %409 = vrot.lane.b32.xlu0 %v408, 127
      %v410 = vpop.permute.xlu0 %409
      %v411 = vrot.slane %v410, 4
      %vm412 = vcmask 1039360
      %v413 = vsel %vm412, %v411, %v410
      %v416 = vmul.f32 %v400, %v413
      %v417 = vmul.f32 %v401, %v411
      %420 = vrot.lane.b32.xlu0 %v416, 1
      %v421 = vpop.permute.xlu0 %420
      %422 = vrot.lane.b32.xlu0 %v417, 1
      %v423 = vpop.permute.xlu0 %422
      %v424 = vrot.slane %v421, 4
      %v425 = vrot.slane %v423, 4
      %v426 = vsel %vm312, %v424, %v425
      %vm427 = vcmask 7168
      %v428 = vsel %vm427, %v421, %v426
      %s430 = scalar_lea.vmem [#allocation3], 24
      %431 = vst [vmem:[%s430] sm:$0xff] %v428
      %v432 = vld [vmem:[#allocation2 + $0x4] sm:$0xff]
      %s433 = scalar_lea.vmem %s0, 8
      %v434 = vld [vmem:[%s433] sm:$0x3]
      %v436 = vperm.slane %v434, 0
      %v437 = vperm.slane %v434, 1
      %v438 = vrot.slane %v437, 4
      %v439 = vsel %vm312, %v436, %v438
      %v441 = vmul.f32 %v432, %v439
      %s442 = scalar_lea.vmem [#allocation3], 32
      %443 = vst [vmem:[%s442] sm:$0xff] %v441
      %v444 = vld [vmem:[#allocation2 + $0x4] sm:$0xff]
      %v445 = vld [vmem:[#allocation2 + $0xc] sm:$0xf]
      %s446 = scalar_lea.vmem %s0, 10
      %v447 = vld [vmem:[%s446] sm:$0x3]
      %v449 = vperm.slane %v447, 0
      %v450 = vperm.slane %v447, 1
      %v451 = vrot.slane %v450, 4
      %v452 = vsel %vm312, %v449, %v451
      %453 = vrot.lane.b32.xlu0 %v452, 1
      %v454 = vpop.permute.xlu0 %453
      %v455 = vrot.slane %v454, 4
      %v456 = vsel %vm427, %v455, %v454
      %v459 = vmul.f32 %v444, %v456
      %v460 = vmul.f32 %v445, %v455
      %463 = vrot.lane.b32.xlu0 %v459, 127
      %v464 = vpop.permute.xlu0 %463
      %465 = vrot.lane.b32.xlu0 %v460, 127
      %v466 = vpop.permute.xlu0 %465
      %v467 = vrot.slane %v464, 4
      %v468 = vrot.slane %v466, 4
      %v469 = vsel %vm312, %v467, %v468
      %v470 = vsel %vm412, %v464, %v469
      %s472 = scalar_lea.vmem [#allocation3], 40
      %473 = vst [vmem:[%s472] sm:$0xff] %v470
      %v474 = vld [vmem:[#allocation2 + $0x4] sm:$0xff]
      %v475 = vld [vmem:[#allocation2 + $0xc] sm:$0xf]
      %s476 = scalar_lea.vmem %s0, 12
      %v477 = vld [vmem:[%s476] sm:$0x3]
      %v479 = vperm.slane %v477, 0
      %v480 = vperm.slane %v477, 1
      %v481 = vrot.slane %v480, 4
      %v482 = vsel %vm312, %v479, %v481
      %483 = vrot.lane.b32.xlu0 %v482, 15
      %v484 = vpop.permute.xlu0 %483
      %v485 = vrot.slane %v484, 4
      %v486 = vsel %vm395, %v485, %v484
      %v489 = vmul.f32 %v474, %v486
      %v490 = vmul.f32 %v475, %v485
      %493 = vrot.lane.b32.xlu0 %v489, 113
      %v494 = vpop.permute.xlu0 %493
      %495 = vrot.lane.b32.xlu0 %v490, 113
      %v496 = vpop.permute.xlu0 %495
      %v497 = vrot.slane %v494, 4
      %v498 = vrot.slane %v496, 4
      %v499 = vsel %vm312, %v497, %v498
      %v500 = vsel %vm380, %v494, %v499
      %s502 = scalar_lea.vmem [#allocation3], 48
      %503 = vst [vmem:[%s502] sm:$0xff] %v500
      %v504 = vld [vmem:[#allocation2 + $0x4] sm:$0xff]
      %v505 = vld [vmem:[#allocation2 + $0xc] sm:$0xf]
      %s506 = scalar_lea.vmem %s0, 14
      %v507 = vld [vmem:[%s506] sm:$0x3]
      %v509 = vperm.slane %v507, 0
      %v510 = vperm.slane %v507, 1
      %v511 = vrot.slane %v510, 4
      %v512 = vsel %vm312, %v509, %v511
      %513 = vrot.lane.b32.xlu0 %v512, 16
      %v514 = vpop.permute.xlu0 %513
      %v515 = vrot.slane %v514, 4
      %v516 = vsel %vm363, %v515, %v514
      %v519 = vmul.f32 %v504, %v516
      %v520 = vmul.f32 %v505, %v515
      %523 = vrot.lane.b32.xlu0 %v519, 112
      %v524 = vpop.permute.xlu0 %523
      %525 = vrot.lane.b32.xlu0 %v520, 112
      %v526 = vpop.permute.xlu0 %525
      %v527 = vrot.slane %v524, 4
      %v528 = vrot.slane %v526, 4
      %v529 = vsel %vm312, %v527, %v528
      %v530 = vsel %vm348, %v524, %v529
      %s532 = scalar_lea.vmem [#allocation3], 56
      %533 = vst [vmem:[%s532] sm:$0xff] %v530
      %v534 = vld [vmem:[#allocation2 + $0x4] sm:$0xff]
      %v535 = vld [vmem:[#allocation2 + $0xc] sm:$0xf]
      %s536 = scalar_lea.vmem %s0, 16
      %v537 = vld [vmem:[%s536] sm:$0x3]
      %v539 = vperm.slane %v537, 0
      %v540 = vperm.slane %v537, 1
      %v541 = vrot.slane %v540, 4
      %v542 = vsel %vm312, %v539, %v541
      %543 = vrot.lane.b32.xlu0 %v542, 17
      %v544 = vpop.permute.xlu0 %543
      %v545 = vrot.slane %v544, 4
      %v546 = vsel %vm332, %v545, %v544
      %v549 = vmul.f32 %v534, %v546
      %v550 = vmul.f32 %v535, %v545
      %553 = vrot.lane.b32.xlu0 %v549, 111
      %v554 = vpop.permute.xlu0 %553
      %555 = vrot.lane.b32.xlu0 %v550, 111
      %v556 = vpop.permute.xlu0 %555
      %v557 = vrot.slane %v554, 4
      %v558 = vrot.slane %v556, 4
      %v559 = vsel %vm312, %v557, %v558
      %v560 = vsel %vm317, %v554, %v559
      %s562 = scalar_lea.vmem [#allocation3], 64
      %563 = vst [vmem:[%s562] sm:$0xff] %v560
      %v564 = vld [vmem:[#allocation3] sm:$0xff]
      %v565 = vld [vmem:[#allocation3 + $0x8] sm:$0xff]
      %v566 = vld [vmem:[#allocation3 + $0x10] sm:$0xff]
      %v567 = vld [vmem:[#allocation3 + $0x18] sm:$0xff]
      %v568 = vld [vmem:[#allocation3 + $0x20] sm:$0xff]
      %v569 = vld [vmem:[#allocation3 + $0x28] sm:$0xff]
      %v570 = vld [vmem:[#allocation3 + $0x30] sm:$0xff]
      %v571 = vld [vmem:[#allocation3 + $0x38] sm:$0xff]
      %v572 = vld [vmem:[#allocation3 + $0x40] sm:$0xff]
      %582 = vst [vmem:[#allocation1] ss:$2 sm:$0xff] %v564
      %s583 = scalar_lea.vmem [#allocation1], 1
      %584 = vst [vmem:[%s583] ss:$2 sm:$0xff] %v565
      %s585 = scalar_lea.vmem [#allocation1], 16
      %586 = vst [vmem:[%s585] ss:$2 sm:$0xff] %v566
      %s587 = scalar_lea.vmem [#allocation1], 17
      %588 = vst [vmem:[%s587] ss:$2 sm:$0xff] %v567
      %s589 = scalar_lea.vmem [#allocation1], 32
      %590 = vst [vmem:[%s589] ss:$2 sm:$0xff] %v568
      %s591 = scalar_lea.vmem [#allocation1], 33
      %592 = vst [vmem:[%s591] ss:$2 sm:$0xff] %v569
      %s593 = scalar_lea.vmem [#allocation1], 48
      %594 = vst [vmem:[%s593] ss:$2 sm:$0xff] %v570
      %s595 = scalar_lea.vmem [#allocation1], 49
      %596 = vst [vmem:[%s595] ss:$2 sm:$0xff] %v571
      %v597 = vld.sshfl [vmem:[#allocation1] sm:$0xff pattern:$0x75316420]
      %v598 = vld.sshfl [vmem:[#allocation1 + $0x8] sm:$0xff pattern:$0x75316420]
      %v599 = vld.sshfl [vmem:[#allocation1 + $0x10] sm:$0xff pattern:$0x75316420]
      %v600 = vld.sshfl [vmem:[#allocation1 + $0x18] sm:$0xff pattern:$0x75316420]
      %v601 = vld.sshfl [vmem:[#allocation1 + $0x20] sm:$0xff pattern:$0x75316420]
      %v602 = vld.sshfl [vmem:[#allocation1 + $0x28] sm:$0xff pattern:$0x75316420]
      %v603 = vld.sshfl [vmem:[#allocation1 + $0x30] sm:$0xff pattern:$0x75316420]
      %v604 = vld.sshfl [vmem:[#allocation1 + $0x38] sm:$0xff pattern:$0x75316420]
      %605 = vst [vmem:[#allocation1] ss:$2 sm:$0xff] %v572
      %v606 = vld.sshfl [vmem:[#allocation1] sm:$0xff pattern:$0x75316420]
      %v607 = vld.sshfl [vmem:[#allocation1 + $0x8] sm:$0xff pattern:$0x75316420]
      %v618 = vpack.c.bf16 %v599, %v597
      %v619 = vpack.c.bf16 %v600, %v598
      %v620 = vpack.c.bf16 %v603, %v601
      %v621 = vpack.c.bf16 %v604, %v602
      %v622 = vpack.c.bf16 %v606, %v606
      %v623 = vpack.c.bf16 %v607, %v607
      %v624 = vld [vmem:[%s2] sm:$0xf]
      %vm625 = vcmask 293888
      %v627 = vsel %vm625, %v624, 0
      %vm629 = vcmask 1041408
      %v631 = vsel %vm629, %v622, 0
      %v634 = vsel %vm629, %v623, 0
      %636 = vmatpush.bf16.msra.mxu0 0
      %637 = vmatpush.bf16.msra.mxu0 0
      %638 = vmatpush.bf16.msra.mxu0 0
      %639 = vmatpush.bf16.msra.mxu0 0
      %640 = vmatpush.bf16.msra.mxu0 0
      %641 = vmatpush.bf16.msra.mxu0 %v631
      %642 = vmatpush.bf16.msra.mxu0 %v620
      %643 = vmatpush.bf16.msra.mxu0 %v618
      %644 = vmatmul.bf16.gmra.mxu0 %v627
      %v645 = vpop.f32.mrf.mxu0
      %v646 = vadd.f32 0.0, %v645
      %v647 = vpop.f32.mrf.mxu0
      %648 = vdwg.mxu0
      %649 = vmatpush.bf16.msra.mxu0 0
      %650 = vmatpush.bf16.msra.mxu0 0
      %651 = vmatpush.bf16.msra.mxu0 0
      %652 = vmatpush.bf16.msra.mxu0 0
      %653 = vmatpush.bf16.msra.mxu0 0
      %654 = vmatpush.bf16.msra.mxu0 %v634
      %655 = vmatpush.bf16.msra.mxu0 %v621
      %656 = vmatpush.bf16.msra.mxu0 %v619
      %657 = vmatmul.bf16.gmra.mxu0 %v627
      %v658 = vpop.f32.mrf.mxu0
      %v659 = vadd.f32 0.0, %v658
      %v660 = vpop.f32.mrf.mxu0
      %661 = vdwg.mxu0
      %662 = vst [vmem:[%s291] sm:$0xff] %v646
      %663 = vst [vmem:[%s291 + $0x8] sm:$0xff] %v659
      %v664 = vadd.f32 %v646, %v659
      %665 = vadd.xlane.f32.xlu0 %v664
      %v666 = vpop.xlane.xlu0 %665
      %667 = vst.msk [vmem:[%s295] sm:$0xff] %vm427, %v666
      %v668 = vmul.f32 %v646, %v646
      %v669 = vmul.f32 %v659, %v659
      %v670 = vadd.f32 %v668, %v669
      %671 = vadd.xlane.f32.xlu0 %v670
      %v672 = vpop.xlane.xlu0 %671
      %673 = vst.msk [vmem:[%s299] sm:$0xff] %vm427, %v672
      %p674 = scmp.lt.s32.totalorder %s19, 1
      %s675 = scalar_select %p674, %s19, 1
      %s676 = smul.addr %s675, 2
      %s677 = smul.addr %s676, 8
      %s678 = scalar_lea.vmem %s5, %s677
      %p679 = scmp.lt.s32.totalorder %s19, 1
      %s680 = scalar_select %p679, %s19, 1
      %s681 = smul.addr %s680, 8
      %s682 = scalar_lea.vmem %s6, %s681
      %p683 = scmp.lt.s32.totalorder %s19, 1
      %s684 = scalar_select %p683, %s19, 1
      %s685 = smul.addr %s684, 8
      %s686 = scalar_lea.vmem %s7, %s685
      // Predicated region
      $region41: #{double_conv.3} parent=39 // pred_check
        %p687 = pneg %p147
      $region42: #{double_conv.3} parent=39 // pred_check_branch
        %689 = sbr.rel (%p687) target = $region44
      $region43: #{double_conv.3} parent=39 // pred_region
        _
      $region44: #{double_conv.3} parent=39 // pred_fallthru
        _
      // Predicated region
      $region45: #{double_conv.3} parent=39 // pred_check
        %p690 = pneg %p173
      $region46: #{double_conv.3} parent=39 // pred_check_branch
        %692 = sbr.rel (%p690) target = $region48
      $region47: #{double_conv.3} parent=39 // pred_region
        _
      $region48: #{double_conv.3} parent=39 // pred_fallthru
        _
      // Predicated region
      $region49: #{double_conv.3} parent=39 // pred_check
        %p693 = pneg %p199
      $region50: #{double_conv.3} parent=39 // pred_check_branch
        %695 = sbr.rel (%p693) target = $region52
      $region51: #{double_conv.3} parent=39 // pred_region
        _
      $region52: #{double_conv.3} parent=39 // pred_fallthru
        _
    $region40: #{double_conv.3} parent=5 // pred_fallthru
      _
    %p696 = scmp.le.s32.totalorder 2, %s14
    // Predicated region
    $region53: #{double_conv.3} parent=5 // pred_check
      %p697 = pneg %p696
    $region54: #{double_conv.3} parent=5 // pred_check_branch
      %699 = sbr.rel (%p697) target = $region56
    $region55: #{double_conv.3} parent=5 // pred_region
      %s700 = ssub.s32 %s14, 2
      // Predicated region
      $region57: #{double_conv.3} parent=55 // pred_check
        %p701 = pneg %p153
      $region58: #{double_conv.3} parent=55 // pred_check_branch
        %703 = sbr.rel (%p701) target = $region60
      $region59: #{double_conv.3} parent=55 // pred_region
        %p704 = scmp.lt.s32.totalorder %s20, 1
        %s705 = scalar_select %p704, %s20, 1
        %s706 = smul.addr %s705, 2
        %s707 = smul.addr %s706, 8
        %s708 = scalar_lea.vmem %s5, %s707
      $region60: #{double_conv.3} parent=55 // pred_fallthru
        _
      // Predicated region
      $region61: #{double_conv.3} parent=55 // pred_check
        %p709 = pneg %p179
      $region62: #{double_conv.3} parent=55 // pred_check_branch
        %711 = sbr.rel (%p709) target = $region64
      $region63: #{double_conv.3} parent=55 // pred_region
        %p712 = scmp.lt.s32.totalorder %s20, 1
        %s713 = scalar_select %p712, %s20, 1
        %s714 = smul.addr %s713, 8
        %s715 = scalar_lea.vmem %s6, %s714
      $region64: #{double_conv.3} parent=55 // pred_fallthru
        _
      // Predicated region
      $region65: #{double_conv.3} parent=55 // pred_check
        %p716 = pneg %p205
      $region66: #{double_conv.3} parent=55 // pred_check_branch
        %718 = sbr.rel (%p716) target = $region68
      $region67: #{double_conv.3} parent=55 // pred_region
        %p719 = scmp.lt.s32.totalorder %s20, 1
        %s720 = scalar_select %p719, %s20, 1
        %s721 = smul.addr %s720, 8
        %s722 = scalar_lea.vmem %s7, %s721
      $region68: #{double_conv.3} parent=55 // pred_fallthru
        _
    $region56: #{double_conv.3} parent=5 // pred_fallthru
      _
  $region6: #{double_conv.3} parent=0 // loop_footer
    %s18 = sadd.s32 1, %s14
  $region7: #{double_conv.3} parent=0 // loop_footer_branch
    %13 = sbr.rel target = $region3
  $region8: #{double_conv.3} parent=0 // loop_exit
    _

// kernel: double_conv.4
$region0: #{double_conv.4}
  #allocation0 [shape = 'u32[]', space=smem, size = 0x4, offset = 0x4, fixed_abs, tag = 'smem constant byte address 0x4 - core index']
  #allocation1 [shape = 'u32[72,128]{1,0:T(1,128)}', space=vmem, size = 0x9000, scoped, tag = 'internal scratch']
  #allocation2 [shape = 'f32[8,512]{1,0:T(8,128)}', space=vmem, size = 0x4000, scoped, tag = 'scratch operand']
  #allocation3 [shape = 'f32[9,8,256]{2,1,0:T(8,128)}', space=vmem, size = 0x12000, scoped, tag = 'scratch operand']
  %s0 = inlined_call_operand.vmem [shape: f32[9,1,256], index: 0, kind: input, shape index: {}]
  %s1 = inlined_call_operand.vmem [shape: f32[2,8,256], index: 1, kind: input, shape index: {}]
  %s2 = inlined_call_operand.vmem [shape: bf16[8,72], index: 2, kind: input, shape index: {}]
  %s3 = inlined_call_operand.vmem [shape: f32[8,1], index: 3, kind: input, shape index: {}]
  %s4 = inlined_call_operand.vmem [shape: f32[8,1], index: 4, kind: input, shape index: {}]
  %s5 = inlined_call_operand.vmem [shape: f32[2,8,256], index: 5, kind: output, shape index: {0}]
  %s6 = inlined_call_operand.vmem [shape: f32[2,8,1], index: 6, kind: output, shape index: {1}]
  %s7 = inlined_call_operand.vmem [shape: f32[2,8,1], index: 7, kind: output, shape index: {2}]
  %8 = xla_tuple %s5, %s6, %s7
  %s9 = sld [smem:[#allocation0]]
  $region69: #{double_conv.4} parent=0
    _
  %s11 = ssub.s32 1, %s9
  %s12 = scalar_select 0, %s11, %s9
  loop: start=0, step=1, limit=4
  $region2: #{double_conv.4} parent=0 // loop_pre_header
    _
  $region3: #{double_conv.4} parent=0 // loop_header
    %s14 = sphi 0, %s18
    %p15 = scmp.ge.s32.totalorder %s14, 4
    %s22 = sphi 0, %s22
    %s24 = sphi 0, %s22
    %s25 = sphi 0, %s24
    %s39 = sphi 0, %s25
    %s45 = sphi 0, %s47
    %s48 = sphi 0, %s45
    %s49 = sphi 0, %s48
    %s65 = sphi 0, %s49
    %s69 = sphi 0, %s69
    %s71 = sphi 0, %s69
    %s72 = sphi 0, %s71
    %s86 = sphi 0, %s72
    %s90 = sphi 0, %s90
    %s92 = sphi 0, %s90
    %s93 = sphi 0, %s92
    %s107 = sphi 0, %s93
    %s111 = sphi 0, %s111
    %s113 = sphi 0, %s111
    %s114 = sphi 0, %s113
    %s128 = sphi 0, %s114
    %s134 = sphi 0, %s136
    %s137 = sphi 0, %s134
    %s138 = sphi 0, %s137
    %s154 = sphi 0, %s138
    %s160 = sphi 0, %s162
    %s163 = sphi 0, %s160
    %s164 = sphi 0, %s163
    %s180 = sphi 0, %s164
    %s186 = sphi 0, %s188
    %s189 = sphi 0, %s186
    %s190 = sphi 0, %s189
    %s206 = sphi 0, %s190
  $region4: #{double_conv.4} parent=0 // loop_header_branch
    %17 = sbr.rel (%p15) target = $region8
  $region5: #{double_conv.4} parent=0 // loop_body
    %s19 = ssub.s32 %s14, 1
    %s20 = ssub.s32 %s14, 2
    %s21 = sadd.s32 %s14, 1
    %s23 = sadd.s32 %s22, 1
    %p26 = scmp.eq.s32.totalorder %s14, 1
    %p27 = scmp.ne.s32.totalorder %s22, %s24
    %p28 = scmp.eq.s32.totalorder %s14, 0
    %p29 = por %p27, %p28
    %p30 = scmp.ne.s32.totalorder %s22, %s24
    %p31 = scmp.eq.s32.totalorder %s19, 1
    %p32 = por %p30, %p31
    %p33 = scmp.ne.s32.totalorder %s24, %s25
    %p34 = scmp.eq.s32.totalorder %s19, 0
    %p35 = por %p33, %p34
    %p36 = scmp.ne.s32.totalorder %s24, %s25
    %p37 = scmp.eq.s32.totalorder %s20, 1
    %p38 = por %p36, %p37
    %p40 = scmp.ne.s32.totalorder %s25, %s39
    %p41 = scmp.eq.s32.totalorder %s20, 0
    %p42 = por %p40, %p41
    %s43 = ssub.s32 %s14, %s21
    %p44 = scmp.eq.s32.totalorder %s43, 0
    %s46 = sadd.s32 %s45, 1
    %s47 = scalar_select %p44, %s45, %s46
    %p50 = pneg %p44
    %p51 = scmp.eq.s32.totalorder %s14, 1
    %p52 = por %p50, %p51
    %p53 = scmp.ne.s32.totalorder %s45, %s48
    %p54 = scmp.eq.s32.totalorder %s14, 0
    %p55 = por %p53, %p54
    %p56 = scmp.ne.s32.totalorder %s45, %s48
    %p57 = scmp.eq.s32.totalorder %s19, 1
    %p58 = por %p56, %p57
    %p59 = scmp.ne.s32.totalorder %s48, %s49
    %p60 = scmp.eq.s32.totalorder %s19, 0
    %p61 = por %p59, %p60
    %p62 = scmp.ne.s32.totalorder %s48, %s49
    %p63 = scmp.eq.s32.totalorder %s20, 1
    %p64 = por %p62, %p63
    %p66 = scmp.ne.s32.totalorder %s49, %s65
    %p67 = scmp.eq.s32.totalorder %s20, 0
    %p68 = por %p66, %p67
    %s70 = sadd.s32 %s69, 1
    %p73 = scmp.eq.s32.totalorder %s14, 1
    %p74 = scmp.ne.s32.totalorder %s69, %s71
    %p75 = scmp.eq.s32.totalorder %s14, 0
    %p76 = por %p74, %p75
    %p77 = scmp.ne.s32.totalorder %s69, %s71
    %p78 = scmp.eq.s32.totalorder %s19, 1
    %p79 = por %p77, %p78
    %p80 = scmp.ne.s32.totalorder %s71, %s72
    %p81 = scmp.eq.s32.totalorder %s19, 0
    %p82 = por %p80, %p81
    %p83 = scmp.ne.s32.totalorder %s71, %s72
    %p84 = scmp.eq.s32.totalorder %s20, 1
    %p85 = por %p83, %p84
    %p87 = scmp.ne.s32.totalorder %s72, %s86
    %p88 = scmp.eq.s32.totalorder %s20, 0
    %p89 = por %p87, %p88
    %s91 = sadd.s32 %s90, 1
    %p94 = scmp.eq.s32.totalorder %s14, 1
    %p95 = scmp.ne.s32.totalorder %s90, %s92
    %p96 = scmp.eq.s32.totalorder %s14, 0
    %p97 = por %p95, %p96
    %p98 = scmp.ne.s32.totalorder %s90, %s92
    %p99 = scmp.eq.s32.totalorder %s19, 1
    %p100 = por %p98, %p99
    %p101 = scmp.ne.s32.totalorder %s92, %s93
    %p102 = scmp.eq.s32.totalorder %s19, 0
    %p103 = por %p101, %p102
    %p104 = scmp.ne.s32.totalorder %s92, %s93
    %p105 = scmp.eq.s32.totalorder %s20, 1
    %p106 = por %p104, %p105
    %p108 = scmp.ne.s32.totalorder %s93, %s107
    %p109 = scmp.eq.s32.totalorder %s20, 0
    %p110 = por %p108, %p109
    %s112 = sadd.s32 %s111, 1
    %p115 = scmp.eq.s32.totalorder %s14, 1
    %p116 = scmp.ne.s32.totalorder %s111, %s113
    %p117 = scmp.eq.s32.totalorder %s14, 0
    %p118 = por %p116, %p117
    %p119 = scmp.ne.s32.totalorder %s111, %s113
    %p120 = scmp.eq.s32.totalorder %s19, 1
    %p121 = por %p119, %p120
    %p122 = scmp.ne.s32.totalorder %s113, %s114
    %p123 = scmp.eq.s32.totalorder %s19, 0
    %p124 = por %p122, %p123
    %p125 = scmp.ne.s32.totalorder %s113, %s114
    %p126 = scmp.eq.s32.totalorder %s20, 1
    %p127 = por %p125, %p126
    %p129 = scmp.ne.s32.totalorder %s114, %s128
    %p130 = scmp.eq.s32.totalorder %s20, 0
    %p131 = por %p129, %p130
    %s132 = ssub.s32 %s14, %s21
    %p133 = scmp.eq.s32.totalorder %s132, 0
    %s135 = sadd.s32 %s134, 1
    %s136 = scalar_select %p133, %s134, %s135
    %p139 = pneg %p133
    %p140 = scmp.eq.s32.totalorder %s14, 1
    %p141 = por %p139, %p140
    %p142 = scmp.ne.s32.totalorder %s134, %s137
    %p143 = scmp.eq.s32.totalorder %s14, 0
    %p144 = por %p142, %p143
    %p145 = scmp.ne.s32.totalorder %s134, %s137
    %p146 = scmp.eq.s32.totalorder %s19, 1
    %p147 = por %p145, %p146
    %p148 = scmp.ne.s32.totalorder %s137, %s138
    %p149 = scmp.eq.s32.totalorder %s19, 0
    %p150 = por %p148, %p149
    %p151 = scmp.ne.s32.totalorder %s137, %s138
    %p152 = scmp.eq.s32.totalorder %s20, 1
    %p153 = por %p151, %p152
    %p155 = scmp.ne.s32.totalorder %s138, %s154
    %p156 = scmp.eq.s32.totalorder %s20, 0
    %p157 = por %p155, %p156
    %s158 = ssub.s32 %s14, %s21
    %p159 = scmp.eq.s32.totalorder %s158, 0
    %s161 = sadd.s32 %s160, 1
    %s162 = scalar_select %p159, %s160, %s161
    %p165 = pneg %p159
    %p166 = scmp.eq.s32.totalorder %s14, 1
    %p167 = por %p165, %p166
    %p168 = scmp.ne.s32.totalorder %s160, %s163
    %p169 = scmp.eq.s32.totalorder %s14, 0
    %p170 = por %p168, %p169
    %p171 = scmp.ne.s32.totalorder %s160, %s163
    %p172 = scmp.eq.s32.totalorder %s19, 1
    %p173 = por %p171, %p172
    %p174 = scmp.ne.s32.totalorder %s163, %s164
    %p175 = scmp.eq.s32.totalorder %s19, 0
    %p176 = por %p174, %p175
    %p177 = scmp.ne.s32.totalorder %s163, %s164
    %p178 = scmp.eq.s32.totalorder %s20, 1
    %p179 = por %p177, %p178
    %p181 = scmp.ne.s32.totalorder %s164, %s180
    %p182 = scmp.eq.s32.totalorder %s20, 0
    %p183 = por %p181, %p182
    %s184 = ssub.s32 %s14, %s21
    %p185 = scmp.eq.s32.totalorder %s184, 0
    %s187 = sadd.s32 %s186, 1
    %s188 = scalar_select %p185, %s186, %s187
    %p191 = pneg %p185
    %p192 = scmp.eq.s32.totalorder %s14, 1
    %p193 = por %p191, %p192
    %p194 = scmp.ne.s32.totalorder %s186, %s189
    %p195 = scmp.eq.s32.totalorder %s14, 0
    %p196 = por %p194, %p195
    %p197 = scmp.ne.s32.totalorder %s186, %s189
    %p198 = scmp.eq.s32.totalorder %s19, 1
    %p199 = por %p197, %p198
    %p200 = scmp.ne.s32.totalorder %s189, %s190
    %p201 = scmp.eq.s32.totalorder %s19, 0
    %p202 = por %p200, %p201
    %p203 = scmp.ne.s32.totalorder %s189, %s190
    %p204 = scmp.eq.s32.totalorder %s20, 1
    %p205 = por %p203, %p204
    %p207 = scmp.ne.s32.totalorder %s190, %s206
    %p208 = scmp.eq.s32.totalorder %s20, 0
    %p209 = por %p207, %p208
    %p210 = scmp.le.s32.totalorder 1, %s14
    %p211 = scmp.lt.s32.totalorder %s14, 3
    %p212 = pnand %p210, %p211
    %p213 = pneg %p212
    // Predicated region
    $region9: #{double_conv.4} parent=5 // pred_check
      _
    $region10: #{double_conv.4} parent=5 // pred_check_branch
      %215 = sbr.rel (%p212) target = $region12
    $region11: #{double_conv.4} parent=5 // pred_region
      %s216 = ssub.s32 %s14, 1
      // Predicated region
      $region13: #{double_conv.4} parent=11 // pred_check
        %p217 = pneg %p35
      $region14: #{double_conv.4} parent=11 // pred_check_branch
        %219 = sbr.rel (%p217) target = $region16
      $region15: #{double_conv.4} parent=11 // pred_region
        _
      $region16: #{double_conv.4} parent=11 // pred_fallthru
        _
      // Predicated region
      $region17: #{double_conv.4} parent=11 // pred_check
        %p220 = pneg %p82
      $region18: #{double_conv.4} parent=11 // pred_check_branch
        %222 = sbr.rel (%p220) target = $region20
      $region19: #{double_conv.4} parent=11 // pred_region
        _
      $region20: #{double_conv.4} parent=11 // pred_fallthru
        _
      // Predicated region
      $region21: #{double_conv.4} parent=11 // pred_check
        %p223 = pneg %p103
      $region22: #{double_conv.4} parent=11 // pred_check_branch
        %225 = sbr.rel (%p223) target = $region24
      $region23: #{double_conv.4} parent=11 // pred_region
        _
      $region24: #{double_conv.4} parent=11 // pred_fallthru
        _
      // Predicated region
      $region25: #{double_conv.4} parent=11 // pred_check
        %p226 = pneg %p124
      $region26: #{double_conv.4} parent=11 // pred_check_branch
        %228 = sbr.rel (%p226) target = $region28
      $region27: #{double_conv.4} parent=11 // pred_region
        _
      $region28: #{double_conv.4} parent=11 // pred_fallthru
        _
    $region12: #{double_conv.4} parent=5 // pred_fallthru
      _
    %p229 = scmp.lt.s32.totalorder %s14, 2
    // Predicated region
    $region29: #{double_conv.4} parent=5 // pred_check
      %p230 = pneg %p229
    $region30: #{double_conv.4} parent=5 // pred_check_branch
      %232 = sbr.rel (%p230) target = $region32
    $region31: #{double_conv.4} parent=5 // pred_region
      // Predicated region
      $region33: #{double_conv.4} parent=31 // pred_check
        %p233 = pneg %p55
      $region34: #{double_conv.4} parent=31 // pred_check_branch
        %235 = sbr.rel (%p233) target = $region36
      $region35: #{double_conv.4} parent=31 // pred_region
        %p236 = scmp.lt.s32.totalorder %s14, 1
        %s237 = scalar_select %p236, %s14, 1
        %s238 = smul.addr %s237, 2
        %s239 = smul.addr %s238, 8
        %s240 = scalar_lea.vmem %s1, %s239
      $region36: #{double_conv.4} parent=31 // pred_fallthru
        _
    $region32: #{double_conv.4} parent=5 // pred_fallthru
      _
    %p241 = scmp.le.s32.totalorder 1, %s14
    %p242 = scmp.lt.s32.totalorder %s14, 3
    %p243 = pnand %p241, %p242
    %p244 = pneg %p243
    // Predicated region
    $region37: #{double_conv.4} parent=5 // pred_check
      _
    $region38: #{double_conv.4} parent=5 // pred_check_branch
      %246 = sbr.rel (%p243) target = $region40
    $region39: #{double_conv.4} parent=5 // pred_region
      %s247 = ssub.s32 %s14, 1
      %p248 = pneg %p35
      %p249 = pneg %p32
      %p250 = scmp.lt.s32.totalorder %s19, 1
      %s251 = scalar_select %p250, %s19, 1
      %s252 = smul.addr %s251, 2
      %s253 = smul.addr %s252, 8
      %s254 = scalar_lea.vmem %s1, %s253
      %p255 = pneg %p61
      %p256 = pneg %p58
      %p257 = pneg %p82
      %p258 = pneg %p79
      %p259 = pneg %p103
      %p260 = pneg %p100
      %p261 = pneg %p124
      %p262 = pneg %p121
      %p263 = pneg %p150
      %p264 = pneg %p147
      %p265 = scmp.lt.s32.totalorder %s19, 1
      %s266 = scalar_select %p265, %s19, 1
      %s267 = smul.addr %s266, 2
      %s268 = smul.addr %s267, 8
      %s269 = scalar_lea.vmem %s5, %s268
      %p270 = pneg %p176
      %p271 = pneg %p173
      %p272 = scmp.lt.s32.totalorder %s19, 1
      %s273 = scalar_select %p272, %s19, 1
      %s274 = smul.addr %s273, 8
      %s275 = scalar_lea.vmem %s6, %s274
      %p276 = pneg %p202
      %p277 = pneg %p199
      %p278 = scmp.lt.s32.totalorder %s19, 1
      %s279 = scalar_select %p278, %s19, 1
      %s280 = smul.addr %s279, 8
      %s281 = scalar_lea.vmem %s7, %s280
      %p282 = scmp.lt.s32.totalorder %s19, 1
      %s283 = scalar_select %p282, %s19, 1
      %s284 = smul.addr %s283, 2
      %s285 = smul.addr %s284, 8
      %s286 = scalar_lea.vmem %s1, %s285
      %p287 = scmp.lt.s32.totalorder %s19, 1
      %s288 = scalar_select %p287, %s19, 1
      %s289 = smul.addr %s288, 2
      %s290 = smul.addr %s289, 8
      %s291 = scalar_lea.vmem %s5, %s290
      %p292 = scmp.lt.s32.totalorder %s19, 1
      %s293 = scalar_select %p292, %s19, 1
      %s294 = smul.addr %s293, 8
      %s295 = scalar_lea.vmem %s6, %s294
      %p296 = scmp.lt.s32.totalorder %s19, 1
      %s297 = scalar_select %p296, %s19, 1
      %s298 = smul.addr %s297, 8
      %s299 = scalar_lea.vmem %s7, %s298
      %v301 = vld [vmem:[%s286] sm:$0xff]
      %v302 = vld [vmem:[%s286 + $0x8] sm:$0xff]
      %v303 = vld [vmem:[%s3] sm:$0xff]
      %305 = vset.pattern.permute.xlu0 0
      %306 = vperm.xlu0 %305, %v303
      %v307 = vpop.permute.xlu0 %306
      %v309 = vmul.f32 %v301, %v307
      %v310 = vmul.f32 %v302, %v307
      %v311 = vld [vmem:[%s4] sm:$0xff]
      %313 = vset.pattern.permute.xlu0 0
      %314 = vperm.xlu0 %313, %v311
      %v315 = vpop.permute.xlu0 %314
      %v317 = vadd.f32 %v309, %v315
      %v318 = vadd.f32 %v310, %v315
      %v319 = vmax.f32 %v317, 0.0
      %v320 = vmax.f32 %v318, 0.0
      %321 = vst [vmem:[#allocation2] sm:$0xff] 0.0
      %322 = vst [vmem:[#allocation2 + $0x8] sm:$0xff] 0.0
      %323 = vst [vmem:[#allocation2 + $0x10] sm:$0xff] 0.0
      %324 = vst [vmem:[#allocation2 + $0x18] sm:$0xff] 0.0
      %325 = vst [vmem:[#allocation2 + $0x8] sm:$0xff] %v319
      %326 = vst [vmem:[#allocation2 + $0x10] sm:$0xff] %v320
      %v327 = vld [vmem:[#allocation2] sm:$0xff]
      %v328 = vld [vmem:[#allocation2 + $0x8] sm:$0xff]
      %v329 = vld [vmem:[#allocation2 + $0x10] sm:$0xff]
      %v330 = vld [vmem:[%s0] sm:$0x3]
      %v332 = vperm.slane %v330, 0
      %v333 = vperm.slane %v330, 1
      %334 = vrot.lane.b32.xlu0 %v332, 111
      %v335 = vpop.permute.xlu0 %334
      %336 = vrot.lane.b32.xlu0 %v333, 111
      %v337 = vpop.permute.xlu0 %336
      %vm338 = vcmask 908288
      %v339 = vsel %vm338, %v335, %v337
      %v343 = vmul.f32 %v327, %v335
      %v344 = vmul.f32 %v328, %v339
      %v345 = vmul.f32 %v329, %v337
      %349 = vrot.lane.b32.xlu0 %v343, 17
      %v350 = vpop.permute.xlu0 %349
      %351 = vrot.lane.b32.xlu0 %v344, 17
      %v352 = vpop.permute.xlu0 %351
      %353 = vrot.lane.b32.xlu0 %v345, 17
      %v354 = vpop.permute.xlu0 %353
      %vm355 = vcmask 138240
      %v356 = vsel %vm355, %v350, %v352
      %v357 = vsel %vm355, %v352, %v354
      %360 = vst [vmem:[#allocation3] sm:$0xff] %v356
      %361 = vst [vmem:[#allocation3 + $0x8] sm:$0xff] %v357
      %v362 = vld [vmem:[#allocation2] sm:$0xff]
      %v363 = vld [vmem:[#allocation2 + $0x8] sm:$0xff]
      %v364 = vld [vmem:[#allocation2 + $0x10] sm:$0xff]
      %s365 = scalar_lea.vmem %s0, 2
      %v366 = vld [vmem:[%s365] sm:$0x3]
      %v368 = vperm.slane %v366, 0
      %v369 = vperm.slane %v366, 1
      %370 = vrot.lane.b32.xlu0 %v368, 112
      %v371 = vpop.permute.xlu0 %370
      %372 = vrot.lane.b32.xlu0 %v369, 112
      %v373 = vpop.permute.xlu0 %372
      %vm374 = vcmask 916480
      %v375 = vsel %vm374, %v371, %v373
      %v379 = vmul.f32 %v362, %v371
      %v380 = vmul.f32 %v363, %v375
      %v381 = vmul.f32 %v364, %v373
      %385 = vrot.lane.b32.xlu0 %v379, 16
      %v386 = vpop.permute.xlu0 %385
      %387 = vrot.lane.b32.xlu0 %v380, 16
      %v388 = vpop.permute.xlu0 %387
      %389 = vrot.lane.b32.xlu0 %v381, 16
      %v390 = vpop.permute.xlu0 %389
      %vm391 = vcmask 130048
      %v392 = vsel %vm391, %v386, %v388
      %v393 = vsel %vm391, %v388, %v390
      %s396 = scalar_lea.vmem [#allocation3], 16
      %397 = vst [vmem:[%s396] sm:$0xff] %v392
      %398 = vst [vmem:[%s396 + $0x8] sm:$0xff] %v393
      %v399 = vld [vmem:[#allocation2] sm:$0xff]
      %v400 = vld [vmem:[#allocation2 + $0x8] sm:$0xff]
      %v401 = vld [vmem:[#allocation2 + $0x10] sm:$0xff]
      %s402 = scalar_lea.vmem %s0, 4
      %v403 = vld [vmem:[%s402] sm:$0x3]
      %v405 = vperm.slane %v403, 0
      %v406 = vperm.slane %v403, 1
      %407 = vrot.lane.b32.xlu0 %v405, 113
      %v408 = vpop.permute.xlu0 %407
      %409 = vrot.lane.b32.xlu0 %v406, 113
      %v410 = vpop.permute.xlu0 %409
      %vm411 = vcmask 924672
      %v412 = vsel %vm411, %v408, %v410
      %v416 = vmul.f32 %v399, %v408
      %v417 = vmul.f32 %v400, %v412
      %v418 = vmul.f32 %v401, %v410
      %422 = vrot.lane.b32.xlu0 %v416, 15
      %v423 = vpop.permute.xlu0 %422
      %424 = vrot.lane.b32.xlu0 %v417, 15
      %v425 = vpop.permute.xlu0 %424
      %426 = vrot.lane.b32.xlu0 %v418, 15
      %v427 = vpop.permute.xlu0 %426
      %vm428 = vcmask 121856
      %v429 = vsel %vm428, %v423, %v425
      %v430 = vsel %vm428, %v425, %v427
      %s433 = scalar_lea.vmem [#allocation3], 32
      %434 = vst [vmem:[%s433] sm:$0xff] %v429
      %435 = vst [vmem:[%s433 + $0x8] sm:$0xff] %v430
      %v436 = vld [vmem:[#allocation2] sm:$0xff]
      %v437 = vld [vmem:[#allocation2 + $0x8] sm:$0xff]
      %v438 = vld [vmem:[#allocation2 + $0x10] sm:$0xff]
      %s439 = scalar_lea.vmem %s0, 6
      %v440 = vld [vmem:[%s439] sm:$0x3]
      %v442 = vperm.slane %v440, 0
      %v443 = vperm.slane %v440, 1
      %444 = vrot.lane.b32.xlu0 %v442, 127
      %v445 = vpop.permute.xlu0 %444
      %446 = vrot.lane.b32.xlu0 %v443, 127
      %v447 = vpop.permute.xlu0 %446
      %vm448 = vcmask 1039360
      %v449 = vsel %vm448, %v445, %v447
      %v453 = vmul.f32 %v436, %v445
      %v454 = vmul.f32 %v437, %v449
      %v455 = vmul.f32 %v438, %v447
      %459 = vrot.lane.b32.xlu0 %v453, 1
      %v460 = vpop.permute.xlu0 %459
      %461 = vrot.lane.b32.xlu0 %v454, 1
      %v462 = vpop.permute.xlu0 %461
      %463 = vrot.lane.b32.xlu0 %v455, 1
      %v464 = vpop.permute.xlu0 %463
      %vm465 = vcmask 7168
      %v466 = vsel %vm465, %v460, %v462
      %v467 = vsel %vm465, %v462, %v464
      %s470 = scalar_lea.vmem [#allocation3], 48
      %471 = vst [vmem:[%s470] sm:$0xff] %v466
      %472 = vst [vmem:[%s470 + $0x8] sm:$0xff] %v467
      %v473 = vld [vmem:[#allocation2 + $0x8] sm:$0xff]
      %v474 = vld [vmem:[#allocation2 + $0x10] sm:$0xff]
      %s475 = scalar_lea.vmem %s0, 8
      %v476 = vld [vmem:[%s475] sm:$0x3]
      %v478 = vperm.slane %v476, 0
      %v479 = vperm.slane %v476, 1
      %v482 = vmul.f32 %v473, %v478
      %v483 = vmul.f32 %v474, %v479
      %s484 = scalar_lea.vmem [#allocation3], 64
      %485 = vst [vmem:[%s484] sm:$0xff] %v482
      %486 = vst [vmem:[%s484 + $0x8] sm:$0xff] %v483
      %v487 = vld [vmem:[#allocation2 + $0x8] sm:$0xff]
      %v488 = vld [vmem:[#allocation2 + $0x10] sm:$0xff]
      %v489 = vld [vmem:[#allocation2 + $0x18] sm:$0xff]
      %s490 = scalar_lea.vmem %s0, 10
      %v491 = vld [vmem:[%s490] sm:$0x3]
      %v493 = vperm.slane %v491, 0
      %v494 = vperm.slane %v491, 1
      %495 = vrot.lane.b32.xlu0 %v493, 1
      %v496 = vpop.permute.xlu0 %495
      %497 = vrot.lane.b32.xlu0 %v494, 1
      %v498 = vpop.permute.xlu0 %497
      %v499 = vsel %vm465, %v496, %v498
      %v503 = vmul.f32 %v487, %v496
      %v504 = vmul.f32 %v488, %v499
      %v505 = vmul.f32 %v489, %v498
      %509 = vrot.lane.b32.xlu0 %v503, 127
      %v510 = vpop.permute.xlu0 %509
      %511 = vrot.lane.b32.xlu0 %v504, 127
      %v512 = vpop.permute.xlu0 %511
      %513 = vrot.lane.b32.xlu0 %v505, 127
      %v514 = vpop.permute.xlu0 %513
      %v515 = vsel %vm448, %v510, %v512
      %v516 = vsel %vm448, %v512, %v514
      %s519 = scalar_lea.vmem [#allocation3], 80
      %520 = vst [vmem:[%s519] sm:$0xff] %v515
      %521 = vst [vmem:[%s519 + $0x8] sm:$0xff] %v516
      %v522 = vld [vmem:[#allocation2 + $0x8] sm:$0xff]
      %v523 = vld [vmem:[#allocation2 + $0x10] sm:$0xff]
      %v524 = vld [vmem:[#allocation2 + $0x18] sm:$0xff]
      %s525 = scalar_lea.vmem %s0, 12
      %v526 = vld [vmem:[%s525] sm:$0x3]
      %v528 = vperm.slane %v526, 0
      %v529 = vperm.slane %v526, 1
      %530 = vrot.lane.b32.xlu0 %v528, 15
      %v531 = vpop.permute.xlu0 %530
      %532 = vrot.lane.b32.xlu0 %v529, 15
      %v533 = vpop.permute.xlu0 %532
      %v534 = vsel %vm428, %v531, %v533
      %v538 = vmul.f32 %v522, %v531
      %v539 = vmul.f32 %v523, %v534
      %v540 = vmul.f32 %v524, %v533
      %544 = vrot.lane.b32.xlu0 %v538, 113
      %v545 = vpop.permute.xlu0 %544
      %546 = vrot.lane.b32.xlu0 %v539, 113
      %v547 = vpop.permute.xlu0 %546
      %548 = vrot.lane.b32.xlu0 %v540, 113
      %v549 = vpop.permute.xlu0 %548
      %v550 = vsel %vm411, %v545, %v547
      %v551 = vsel %vm411, %v547, %v549
      %s554 = scalar_lea.vmem [#allocation3], 96
      %555 = vst [vmem:[%s554] sm:$0xff] %v550
      %556 = vst [vmem:[%s554 + $0x8] sm:$0xff] %v551
      %v557 = vld [vmem:[#allocation2 + $0x8] sm:$0xff]
      %v558 = vld [vmem:[#allocation2 + $0x10] sm:$0xff]
      %v559 = vld [vmem:[#allocation2 + $0x18] sm:$0xff]
      %s560 = scalar_lea.vmem %s0, 14
      %v561 = vld [vmem:[%s560] sm:$0x3]
      %v563 = vperm.slane %v561, 0
      %v564 = vperm.slane %v561, 1
      %565 = vrot.lane.b32.xlu0 %v563, 16
      %v566 = vpop.permute.xlu0 %565
      %567 = vrot.lane.b32.xlu0 %v564, 16
      %v568 = vpop.permute.xlu0 %567
      %v569 = vsel %vm391, %v566, %v568
      %v573 = vmul.f32 %v557, %v566
      %v574 = vmul.f32 %v558, %v569
      %v575 = vmul.f32 %v559, %v568
      %579 = vrot.lane.b32.xlu0 %v573, 112
      %v580 = vpop.permute.xlu0 %579
      %581 = vrot.lane.b32.xlu0 %v574, 112
      %v582 = vpop.permute.xlu0 %581
      %583 = vrot.lane.b32.xlu0 %v575, 112
      %v584 = vpop.permute.xlu0 %583
      %v585 = vsel %vm374, %v580, %v582
      %v586 = vsel %vm374, %v582, %v584
      %s589 = scalar_lea.vmem [#allocation3], 112
      %590 = vst [vmem:[%s589] sm:$0xff] %v585
      %591 = vst [vmem:[%s589 + $0x8] sm:$0xff] %v586
      %v592 = vld [vmem:[#allocation2 + $0x8] sm:$0xff]
      %v593 = vld [vmem:[#allocation2 + $0x10] sm:$0xff]
      %v594 = vld [vmem:[#allocation2 + $0x18] sm:$0xff]
      %s595 = scalar_lea.vmem %s0, 16
      %v596 = vld [vmem:[%s595] sm:$0x3]
      %v598 = vperm.slane %v596, 0
      %v599 = vperm.slane %v596, 1
      %600 = vrot.lane.b32.xlu0 %v598, 17
      %v601 = vpop.permute.xlu0 %600
      %602 = vrot.lane.b32.xlu0 %v599, 17
      %v603 = vpop.permute.xlu0 %602
      %v604 = vsel %vm355, %v601, %v603
      %v608 = vmul.f32 %v592, %v601
      %v609 = vmul.f32 %v593, %v604
      %v610 = vmul.f32 %v594, %v603
      %614 = vrot.lane.b32.xlu0 %v608, 111
      %v615 = vpop.permute.xlu0 %614
      %616 = vrot.lane.b32.xlu0 %v609, 111
      %v617 = vpop.permute.xlu0 %616
      %618 = vrot.lane.b32.xlu0 %v610, 111
      %v619 = vpop.permute.xlu0 %618
      %v620 = vsel %vm338, %v615, %v617
      %v621 = vsel %vm338, %v617, %v619
      %s624 = scalar_lea.vmem [#allocation3], 128
      %625 = vst [vmem:[%s624] sm:$0xff] %v620
      %626 = vst [vmem:[%s624 + $0x8] sm:$0xff] %v621
      %v627 = vld [vmem:[#allocation3] sm:$0xff]
      %v628 = vld [vmem:[#allocation3 + $0x8] sm:$0xff]
      %v629 = vld [vmem:[#allocation3 + $0x10] sm:$0xff]
      %v630 = vld [vmem:[#allocation3 + $0x18] sm:$0xff]
      %v631 = vld [vmem:[#allocation3 + $0x20] sm:$0xff]
      %v632 = vld [vmem:[#allocation3 + $0x28] sm:$0xff]
      %v633 = vld [vmem:[#allocation3 + $0x30] sm:$0xff]
      %v634 = vld [vmem:[#allocation3 + $0x38] sm:$0xff]
      %v635 = vld [vmem:[#allocation3 + $0x40] sm:$0xff]
      %v636 = vld [vmem:[#allocation3 + $0x48] sm:$0xff]
      %v637 = vld [vmem:[#allocation3 + $0x50] sm:$0xff]
      %v638 = vld [vmem:[#allocation3 + $0x58] sm:$0xff]
      %v639 = vld [vmem:[#allocation3 + $0x60] sm:$0xff]
      %v640 = vld [vmem:[#allocation3 + $0x68] sm:$0xff]
      %v641 = vld [vmem:[#allocation3 + $0x70] sm:$0xff]
      %v642 = vld [vmem:[#allocation3 + $0x78] sm:$0xff]
      %v643 = vld [vmem:[#allocation3 + $0x80] sm:$0xff]
      %v644 = vld [vmem:[#allocation3 + $0x88] sm:$0xff]
      %v645 = vpack.c.bf16 %v629, %v627
      %v646 = vpack.c.bf16 %v630, %v628
      %v647 = vpack.c.bf16 %v633, %v631
      %v648 = vpack.c.bf16 %v634, %v632
      %v649 = vpack.c.bf16 %v637, %v635
      %v650 = vpack.c.bf16 %v638, %v636
      %v651 = vpack.c.bf16 %v641, %v639
      %v652 = vpack.c.bf16 %v642, %v640
      %v653 = vpack.c.bf16 %v643, %v643
      %v654 = vpack.c.bf16 %v644, %v644
      %v655 = vld [vmem:[%s2] sm:$0xf]
      %vm656 = vcmask 588800
      %v658 = vsel %vm656, %v655, 0
      %vm660 = vcmask 1043456
      %v662 = vsel %vm660, %v653, 0
      %v665 = vsel %vm660, %v654, 0
      %667 = vmatpush.bf16.msra.mxu0 0
      %668 = vmatpush.bf16.msra.mxu0 0
      %669 = vmatpush.bf16.msra.mxu0 0
      %670 = vmatpush.bf16.msra.mxu0 %v662
      %671 = vmatpush.bf16.msra.mxu0 %v651
      %672 = vmatpush.bf16.msra.mxu0 %v649
      %673 = vmatpush.bf16.msra.mxu0 %v647
      %674 = vmatpush.bf16.msra.mxu0 %v645
      %675 = vmatmul.bf16.gmra.mxu0 %v658
      %v676 = vpop.f32.mrf.mxu0
      %v677 = vadd.f32 0.0, %v676
      %v678 = vpop.f32.mrf.mxu0
      %679 = vdwg.mxu0
      %680 = vmatpush.bf16.msra.mxu0 0
      %681 = vmatpush.bf16.msra.mxu0 0
      %682 = vmatpush.bf16.msra.mxu0 0
      %683 = vmatpush.bf16.msra.mxu0 %v665
      %684 = vmatpush.bf16.msra.mxu0 %v652
      %685 = vmatpush.bf16.msra.mxu0 %v650
      %686 = vmatpush.bf16.msra.mxu0 %v648
      %687 = vmatpush.bf16.msra.mxu0 %v646
      %688 = vmatmul.bf16.gmra.mxu0 %v658
      %v689 = vpop.f32.mrf.mxu0
      %v690 = vadd.f32 0.0, %v689
      %v691 = vpop.f32.mrf.mxu0
      %692 = vdwg.mxu0
      %693 = vst [vmem:[%s291] sm:$0xff] %v677
      %694 = vst [vmem:[%s291 + $0x8] sm:$0xff] %v690
      %v695 = vadd.f32 %v677, %v690
      %696 = vadd.xlane.f32.xlu0 %v695
      %v697 = vpop.xlane.xlu0 %696
      %698 = vst.msk [vmem:[%s295] sm:$0xff] %vm465, %v697
      %v699 = vmul.f32 %v677, %v677
      %v700 = vmul.f32 %v690, %v690
      %v701 = vadd.f32 %v699, %v700
      %702 = vadd.xlane.f32.xlu0 %v701
      %v703 = vpop.xlane.xlu0 %702
      %704 = vst.msk [vmem:[%s299] sm:$0xff] %vm465, %v703
      %p705 = scmp.lt.s32.totalorder %s19, 1
      %s706 = scalar_select %p705, %s19, 1
      %s707 = smul.addr %s706, 2
      %s708 = smul.addr %s707, 8
      %s709 = scalar_lea.vmem %s5, %s708
      %p710 = scmp.lt.s32.totalorder %s19, 1
      %s711 = scalar_select %p710, %s19, 1
      %s712 = smul.addr %s711, 8
      %s713 = scalar_lea.vmem %s6, %s712
      %p714 = scmp.lt.s32.totalorder %s19, 1
      %s715 = scalar_select %p714, %s19, 1
      %s716 = smul.addr %s715, 8
      %s717 = scalar_lea.vmem %s7, %s716
      // Predicated region
      $region41: #{double_conv.4} parent=39 // pred_check
        %p718 = pneg %p147
      $region42: #{double_conv.4} parent=39 // pred_check_branch
        %720 = sbr.rel (%p718) target = $region44
      $region43: #{double_conv.4} parent=39 // pred_region
        _
      $region44: #{double_conv.4} parent=39 // pred_fallthru
        _
      // Predicated region
      $region45: #{double_conv.4} parent=39 // pred_check
        %p721 = pneg %p173
      $region46: #{double_conv.4} parent=39 // pred_check_branch
        %723 = sbr.rel (%p721) target = $region48
      $region47: #{double_conv.4} parent=39 // pred_region
        _
      $region48: #{double_conv.4} parent=39 // pred_fallthru
        _
      // Predicated region
      $region49: #{double_conv.4} parent=39 // pred_check
        %p724 = pneg %p199
      $region50: #{double_conv.4} parent=39 // pred_check_branch
        %726 = sbr.rel (%p724) target = $region52
      $region51: #{double_conv.4} parent=39 // pred_region
        _
      $region52: #{double_conv.4} parent=39 // pred_fallthru
        _
    $region40: #{double_conv.4} parent=5 // pred_fallthru
      _
    %p727 = scmp.le.s32.totalorder 2, %s14
    // Predicated region
    $region53: #{double_conv.4} parent=5 // pred_check
      %p728 = pneg %p727
    $region54: #{double_conv.4} parent=5 // pred_check_branch
      %730 = sbr.rel (%p728) target = $region56
    $region55: #{double_conv.4} parent=5 // pred_region
      %s731 = ssub.s32 %s14, 2
      // Predicated region
      $region57: #{double_conv.4} parent=55 // pred_check
        %p732 = pneg %p153
      $region58: #{double_conv.4} parent=55 // pred_check_branch
        %734 = sbr.rel (%p732) target = $region60
      $region59: #{double_conv.4} parent=55 // pred_region
        %p735 = scmp.lt.s32.totalorder %s20, 1
        %s736 = scalar_select %p735, %s20, 1
        %s737 = smul.addr %s736, 2
        %s738 = smul.addr %s737, 8
        %s739 = scalar_lea.vmem %s5, %s738
      $region60: #{double_conv.4} parent=55 // pred_fallthru
        _
      // Predicated region
      $region61: #{double_conv.4} parent=55 // pred_check
        %p740 = pneg %p179
      $region62: #{double_conv.4} parent=55 // pred_check_branch
        %742 = sbr.rel (%p740) target = $region64
      $region63: #{double_conv.4} parent=55 // pred_region
        %p743 = scmp.lt.s32.totalorder %s20, 1
        %s744 = scalar_select %p743, %s20, 1
        %s745 = smul.addr %s744, 8
        %s746 = scalar_lea.vmem %s6, %s745
      $region64: #{double_conv.4} parent=55 // pred_fallthru
        _
      // Predicated region
      $region65: #{double_conv.4} parent=55 // pred_check
        %p747 = pneg %p205
      $region66: #{double_conv.4} parent=55 // pred_check_branch
        %749 = sbr.rel (%p747) target = $region68
      $region67: #{double_conv.4} parent=55 // pred_region
        %p750 = scmp.lt.s32.totalorder %s20, 1
        %s751 = scalar_select %p750, %s20, 1
        %s752 = smul.addr %s751, 8
        %s753 = scalar_lea.vmem %s7, %s752
      $region68: #{double_conv.4} parent=55 // pred_fallthru
        _
    $region56: #{double_conv.4} parent=5 // pred_fallthru
      _
  $region6: #{double_conv.4} parent=0 // loop_footer
    %s18 = sadd.s32 1, %s14
  $region7: #{double_conv.4} parent=0 // loop_footer_branch
    %13 = sbr.rel target = $region3
  $region8: #{double_conv.4} parent=0 // loop_exit
    _

</llo_original>
